<compile_context>
chip_gen: v7x
topology: tpu7x:2x2x1
jax: 0.10.0
libtpu: 0.0.40
codegen_flags: <defaults>
</compile_context>

<pallas_src>
import functools

import jax
import jax.numpy as jnp
from jax.experimental import pallas as pl
from jax.experimental.pallas import tpu as pltpu

_VMEM_LIMIT = 48 * 1024 * 1024          # scoped-VMEM cap we request (safe on v5e/v6e/v7x)
_RESIDENT_BUDGET = 36 * 1024 * 1024     # max estimated VMEM for the resident-L fast path
_TILED_VMEM_BUDGET = 40 * 1024 * 1024   # max estimated working set for the tiled path


def _round_up(x, m):
    return ((x + m - 1) // m) * m


# --------------------------------------------------------------------------------------
# Fast path: L held resident in VMEM, all K-1 hops in a single pallas_call.
# --------------------------------------------------------------------------------------
def _resident_kernel(theta_ref, l_ref, x0_ref, h_ref, xk_ref, *, k_hops):
    """h = theta[0]*x0 ; for k in 1..K-1: x = L @ x ; h += theta[k] * x."""
    x0 = x0_ref[...]                                   # (n_p, f_p) f32
    h_ref[...] = theta_ref[0] * x0
    xk_ref[...] = x0.astype(jnp.bfloat16)              # bf16 carry for the MXU operand
    for k in range(1, k_hops):                         # static unroll (K is small)
        x_new = jnp.dot(l_ref[...], xk_ref[...],
                        preferred_element_type=jnp.float32)
        h_ref[...] = h_ref[...] + theta_ref[k] * x_new
        if k + 1 < k_hops:
            xk_ref[...] = x_new.astype(jnp.bfloat16)


# --------------------------------------------------------------------------------------
# Tiled path: one Laplacian hop  (x_new = L @ x ; h_new = h + theta_k * x_new).
# Grid = (row tiles, feature tiles, reduction tiles); reduction axis last.
# --------------------------------------------------------------------------------------
def _hop_kernel(theta_ref, l_ref, x_ref, hin_ref, xnew_ref, hnew_ref, acc_ref):
    k = pl.program_id(2)

    @pl.when(k == 0)
    def _init():
        acc_ref[...] = jnp.zeros_like(acc_ref)

    # L tile (bf16) x x tile (bf16, streamed from HBM in bf16) -> f32 accumulator.
    acc_ref[...] += jnp.dot(l_ref[...], x_ref[...],
                            preferred_element_type=jnp.float32)

    @pl.when(k == pl.num_programs(2) - 1)
    def _finalize():
        x_new = acc_ref[...]                           # f32
        xnew_ref[...] = x_new.astype(jnp.bfloat16)     # bf16 stream for the next hop
        hnew_ref[...] = hin_ref[...] + theta_ref[0] * x_new


def _resident_vmem_estimate(n_p, f_p):
    # L bf16 + (x0 f32 + h f32 + intermediate f32 + x carry bf16) + slack
    return 2 * n_p * n_p + 16 * n_p * f_p


def _tiled_vmem_estimate(tm, tk, tf):
    nbuf = 2  # double buffering per BlockSpec
    return (tm * tk * 2 * nbuf          # L tile stream (bf16)
            + tk * tf * 2 * nbuf        # x tile stream (bf16)
            + tm * tf * 4 * nbuf        # h_in tile stream (f32)
            + tm * tf * 2 * nbuf        # x_new output (bf16)
            + tm * tf * 4 * nbuf        # h_new output (f32)
            + tm * tf * 4)              # f32 accumulator scratch


def _fit_tiles(tm, tk, tf, budget=_TILED_VMEM_BUDGET):
    while _tiled_vmem_estimate(tm, tk, tf) > budget and tf > 128:
        tf = max(128, _round_up(tf // 2, 128))
    while _tiled_vmem_estimate(tm, tk, tf) > budget and tm > 128:
        tm = max(128, _round_up(tm // 2, 128))
        tk = tm
    return tm, tk, tf


@functools.partial(jax.jit,
                   static_argnames=("theta", "block_n", "block_f", "force_tiled"))
def poly_conv_batch(adj, feat, theta, *, block_n=512, block_f=1024, force_tiled=False):
    """PolyConvBatch.forward(block, feat) with the DGL block given as a dense adjacency.

    adj:   (N, N) dense adjacency (row i = out-edges of node i)
    feat:  (N, F) node features
    theta: tuple of Python floats (polynomial coefficients), K = len(theta)
    """
    n, f = feat.shape
    assert adj.shape == (n, n)
    k_hops = len(theta)

    adj = adj.astype(jnp.float32)
    feat = feat.astype(jnp.float32)

    # One-time symmetric normalization with the identity folded in:
    #   L = I - D^-1/2 A D^-1/2   (built in f32, used in bf16 by the kernels).
    deg = jnp.sum(adj, axis=-1, keepdims=True)                  # out-degree
    d_invsqrt = jax.lax.rsqrt(jnp.maximum(deg, 1.0))            # clamp(min=1)^-0.5
    lap = jnp.eye(n, dtype=jnp.float32) - (d_invsqrt * adj) * jnp.transpose(d_invsqrt)

    if k_hops == 1:
        return theta[0] * feat

    n_p128 = _round_up(n, 128)
    f_p128 = _round_up(f, 128)

    resident_ok = (not force_tiled) and (
        _resident_vmem_estimate(n_p128, f_p128) <= _RESIDENT_BUDGET)

    if resident_ok:
        # ------------------ resident-L fast path (single pallas_call) ------------------
        n_p, f_p = n_p128, f_p128
        lap_p = jnp.pad(lap, ((0, n_p - n), (0, n_p - n))).astype(jnp.bfloat16)
        x0 = jnp.pad(feat, ((0, n_p - n), (0, f_p - f)))        # f32, zero padding exact
        theta_arr = jnp.asarray(theta, dtype=jnp.float32)       # (K,) in SMEM

        h = pl.pallas_call(
            functools.partial(_resident_kernel, k_hops=k_hops),
            out_shape=jax.ShapeDtypeStruct((n_p, f_p), jnp.float32),
            grid=(1,),
            in_specs=[
                pl.BlockSpec(memory_space=pltpu.MemorySpace.SMEM),   # theta (K,)
                pl.BlockSpec((n_p, n_p), lambda i: (0, 0)),          # L resident in VMEM
                pl.BlockSpec((n_p, f_p), lambda i: (0, 0)),          # x0 (f32)
            ],
            out_specs=pl.BlockSpec((n_p, f_p), lambda i: (0, 0)),
            scratch_shapes=[pltpu.VMEM((n_p, f_p), jnp.bfloat16)],   # bf16 x carry
            compiler_params=pltpu.CompilerParams(
                dimension_semantics=("arbitrary",),
                vmem_limit_bytes=_VMEM_LIMIT),
        )(theta_arr, lap_p, x0)
        return h[:n, :f]

    # ---------------------- tiled multi-call path (large graphs) -----------------------
    tm = tk = min(_round_up(block_n, 128), n_p128)
    tf = min(_round_up(block_f, 128), f_p128)
    tm, tk, tf = _fit_tiles(tm, tk, tf)

    n_p = _round_up(n, tm)            # tm == tk, so a single pad serves rows & reduction
    f_p = _round_up(f, tf)

    lap_p = jnp.pad(lap, ((0, n_p - n), (0, n_p - n))).astype(jnp.bfloat16)
    x_pad = jnp.pad(feat, ((0, n_p - n), (0, f_p - f)))          # f32
    x_b = x_pad.astype(jnp.bfloat16)                             # bf16 matmul stream
    h = theta[0] * x_pad                                         # f32 accumulator

    grid = (n_p // tm, f_p // tf, n_p // tk)
    hop = pl.pallas_call(
        _hop_kernel,
        out_shape=(
            jax.ShapeDtypeStruct((n_p, f_p), jnp.bfloat16),      # x_new (bf16 for next hop)
            jax.ShapeDtypeStruct((n_p, f_p), jnp.float32),       # h_new
        ),
        grid=grid,
        in_specs=[
            pl.BlockSpec(memory_space=pltpu.MemorySpace.SMEM),   # theta_k scalar, shape (1,)
            pl.BlockSpec((tm, tk), lambda i, j, k: (i, k)),      # L tile (bf16)
            pl.BlockSpec((tk, tf), lambda i, j, k: (k, j)),      # x tile (bf16)
            pl.BlockSpec((tm, tf), lambda i, j, k: (i, j)),      # h_in tile (f32, finalize)
        ],
        out_specs=(
            pl.BlockSpec((tm, tf), lambda i, j, k: (i, j)),
            pl.BlockSpec((tm, tf), lambda i, j, k: (i, j)),
        ),
        scratch_shapes=[pltpu.VMEM((tm, tf), jnp.float32)],      # f32 accumulator
        input_output_aliases={3: 1},                             # h_in -> h_new (in place)
        compiler_params=pltpu.CompilerParams(
            dimension_semantics=("parallel", "parallel", "arbitrary"),
            vmem_limit_bytes=_VMEM_LIMIT),
    )

    for kk in range(1, k_hops):
        theta_k = jnp.full((1,), theta[kk], dtype=jnp.float32)
        x_b, h = hop(theta_k, lap_p, x_b, h)

    return h[:n, :f]


def _reference(adj, feat, theta):
    """Pure-JAX f32 reference mirroring the PyTorch forward."""
    deg = jnp.sum(adj, axis=-1, keepdims=True)
    d_invsqrt = jnp.power(jnp.maximum(deg, 1.0), -0.5)
    h = theta[0] * feat
    x = feat
    for k in range(1, len(theta)):
        x = x - (adj @ (x * d_invsqrt)) * d_invsqrt
        h = h + theta[k] * x
    return h


if __name__ == "__main__":
    key = jax.random.PRNGKey(0)
    k_adj, k_feat = jax.random.split(key)

    N = 200   # number of nodes (unaligned on purpose; wrapper pads to 256)
    F = 96    # feature dim (module never projects, so out dim == in dim; padded to 128)
    theta = (0.5, 0.3, 0.15, 0.05)  # K = 4 polynomial hops

    # Deterministic random symmetric {0,1} adjacency with zero diagonal.
    rand = jax.random.uniform(k_adj, (N, N))
    adj = (rand < 0.3).astype(jnp.float32)
    adj = jnp.maximum(adj, adj.T)
    adj = adj * (1.0 - jnp.eye(N, dtype=jnp.float32))

    feat = jax.random.normal(k_feat, (N, F), dtype=jnp.float32)

    ref = _reference(adj, feat, theta)

    # Fast path: L resident in VMEM, all hops inside one pallas_call.
    out_res = jax.block_until_ready(poly_conv_batch(adj, feat, theta=theta))
    # Streaming tiled path (forced so both kernels are compiled and validated).
    out_tiled = jax.block_until_ready(
        poly_conv_batch(adj, feat, theta=theta, force_tiled=True))

    assert out_res.shape == (N, F)
    assert out_tiled.shape == (N, F)
    # bf16 L and bf16 matmul operands with f32 accumulation => relaxed tolerance.
    for out in (out_res, out_tiled):
        max_err = float(jnp.max(jnp.abs(out - ref)))
        assert jnp.allclose(out, ref, atol=5e-2, rtol=5e-2), f"mismatch vs reference: {max_err}"

    print("KERNEL_OK")
</pallas_src>

<mosaic_0001>
module attributes {stable_mosaic.version = 11 : i64} {
  func.func @_resident_kernel(%arg0: i32, %arg1: memref<4xf32, #tpu.memory_space<smem>>, %arg2: memref<256x256xbf16, #tpu.memory_space<vmem>>, %arg3: memref<256x128xf32, #tpu.memory_space<vmem>>, %arg4: memref<256x128xf32, #tpu.memory_space<vmem>>, %arg5: memref<256x128xbf16, #tpu.memory_space<vmem>>) attributes {dimension_semantics = [#tpu.dimension_semantics<arbitrary>], iteration_bounds = array<i64: 1>, scalar_prefetch = 0 : i64, scratch_operands = 1 : i64, tpu.core_type = #tpu.core_type<tc>, window_params = [{transform_indices = @transform_0, window_bounds = array<i64: 4>}, {pipeline_mode = #tpu.pipeline_mode<synchronous>, transform_indices = @transform_1, window_bounds = array<i64: 256, 256>}, {pipeline_mode = #tpu.pipeline_mode<synchronous>, transform_indices = @transform_2, window_bounds = array<i64: 256, 128>}, {pipeline_mode = #tpu.pipeline_mode<synchronous>, transform_indices = @transform_3, window_bounds = array<i64: 256, 128>}]} {
    %c0 = arith.constant 0 : index
    %c0_0 = arith.constant 0 : index
    %0 = vector.load %arg3[%c0, %c0_0] : memref<256x128xf32, #tpu.memory_space<vmem>>, vector<256x128xf32>
    %c0_1 = arith.constant 0 : index
    %1 = memref.load %arg1[%c0_1] : memref<4xf32, #tpu.memory_space<smem>>
    %2 = vector.broadcast %1 : f32 to vector<256x128xf32>
    %3 = arith.mulf %2, %0 : vector<256x128xf32>
    %c0_2 = arith.constant 0 : index
    %c0_3 = arith.constant 0 : index
    %4 = vector.load %arg4[%c0_2, %c0_3] : memref<256x128xf32, #tpu.memory_space<vmem>>, vector<256x128xf32>
    tpu.vector_store %arg4[%c0_2, %c0_3], %3 {strides = array<i32>} : memref<256x128xf32, #tpu.memory_space<vmem>>, vector<256x128xf32>,
    %5 = arith.truncf %0 : vector<256x128xf32> to vector<256x128xbf16>
    %c0_4 = arith.constant 0 : index
    %c0_5 = arith.constant 0 : index
    %6 = vector.load %arg5[%c0_4, %c0_5] : memref<256x128xbf16, #tpu.memory_space<vmem>>, vector<256x128xbf16>
    tpu.vector_store %arg5[%c0_4, %c0_5], %5 {strides = array<i32>} : memref<256x128xbf16, #tpu.memory_space<vmem>>, vector<256x128xbf16>,
    %c0_6 = arith.constant 0 : index
    %c0_7 = arith.constant 0 : index
    %7 = vector.load %arg2[%c0_6, %c0_7] : memref<256x256xbf16, #tpu.memory_space<vmem>>, vector<256x256xbf16>
    %c0_8 = arith.constant 0 : index
    %c0_9 = arith.constant 0 : index
    %8 = vector.load %arg5[%c0_8, %c0_9] : memref<256x128xbf16, #tpu.memory_space<vmem>>, vector<256x128xbf16>
    %cst = arith.constant dense<0.000000e+00> : vector<256x128xf32>
    %9 = tpu.matmul %7, %8, %cst {dimension_numbers = #tpu.dot_dimension_numbers<[1], [0], [0], [1], [0, 0, 1, 1], [], []>} : vector<256x256xbf16>, vector<256x128xbf16>, vector<256x128xf32> -> vector<256x128xf32>
    %c0_10 = arith.constant 0 : index
    %c0_11 = arith.constant 0 : index
    %10 = vector.load %arg4[%c0_10, %c0_11] : memref<256x128xf32, #tpu.memory_space<vmem>>, vector<256x128xf32>
    %c1 = arith.constant 1 : index
    %11 = memref.load %arg1[%c1] : memref<4xf32, #tpu.memory_space<smem>>
    %12 = vector.broadcast %11 : f32 to vector<256x128xf32>
    %13 = arith.mulf %12, %9 : vector<256x128xf32>
    %14 = arith.addf %10, %13 : vector<256x128xf32>
    %c0_12 = arith.constant 0 : index
    %c0_13 = arith.constant 0 : index
    %15 = vector.load %arg4[%c0_12, %c0_13] : memref<256x128xf32, #tpu.memory_space<vmem>>, vector<256x128xf32>
    tpu.vector_store %arg4[%c0_12, %c0_13], %14 {strides = array<i32>} : memref<256x128xf32, #tpu.memory_space<vmem>>, vector<256x128xf32>,
    %16 = arith.truncf %9 : vector<256x128xf32> to vector<256x128xbf16>
    %c0_14 = arith.constant 0 : index
    %c0_15 = arith.constant 0 : index
    %17 = vector.load %arg5[%c0_14, %c0_15] : memref<256x128xbf16, #tpu.memory_space<vmem>>, vector<256x128xbf16>
    tpu.vector_store %arg5[%c0_14, %c0_15], %16 {strides = array<i32>} : memref<256x128xbf16, #tpu.memory_space<vmem>>, vector<256x128xbf16>,
    %c0_16 = arith.constant 0 : index
    %c0_17 = arith.constant 0 : index
    %18 = vector.load %arg2[%c0_16, %c0_17] : memref<256x256xbf16, #tpu.memory_space<vmem>>, vector<256x256xbf16>
    %c0_18 = arith.constant 0 : index
    %c0_19 = arith.constant 0 : index
    %19 = vector.load %arg5[%c0_18, %c0_19] : memref<256x128xbf16, #tpu.memory_space<vmem>>, vector<256x128xbf16>
    %cst_20 = arith.constant dense<0.000000e+00> : vector<256x128xf32>
    %20 = tpu.matmul %18, %19, %cst_20 {dimension_numbers = #tpu.dot_dimension_numbers<[1], [0], [0], [1], [0, 0, 1, 1], [], []>} : vector<256x256xbf16>, vector<256x128xbf16>, vector<256x128xf32> -> vector<256x128xf32>
    %c0_21 = arith.constant 0 : index
    %c0_22 = arith.constant 0 : index
    %21 = vector.load %arg4[%c0_21, %c0_22] : memref<256x128xf32, #tpu.memory_space<vmem>>, vector<256x128xf32>
    %c2 = arith.constant 2 : index
    %22 = memref.load %arg1[%c2] : memref<4xf32, #tpu.memory_space<smem>>
    %23 = vector.broadcast %22 : f32 to vector<256x128xf32>
    %24 = arith.mulf %23, %20 : vector<256x128xf32>
    %25 = arith.addf %21, %24 : vector<256x128xf32>
    %c0_23 = arith.constant 0 : index
    %c0_24 = arith.constant 0 : index
    %26 = vector.load %arg4[%c0_23, %c0_24] : memref<256x128xf32, #tpu.memory_space<vmem>>, vector<256x128xf32>
    tpu.vector_store %arg4[%c0_23, %c0_24], %25 {strides = array<i32>} : memref<256x128xf32, #tpu.memory_space<vmem>>, vector<256x128xf32>,
    %27 = arith.truncf %20 : vector<256x128xf32> to vector<256x128xbf16>
    %c0_25 = arith.constant 0 : index
    %c0_26 = arith.constant 0 : index
    %28 = vector.load %arg5[%c0_25, %c0_26] : memref<256x128xbf16, #tpu.memory_space<vmem>>, vector<256x128xbf16>
    tpu.vector_store %arg5[%c0_25, %c0_26], %27 {strides = array<i32>} : memref<256x128xbf16, #tpu.memory_space<vmem>>, vector<256x128xbf16>,
    %c0_27 = arith.constant 0 : index
    %c0_28 = arith.constant 0 : index
    %29 = vector.load %arg2[%c0_27, %c0_28] : memref<256x256xbf16, #tpu.memory_space<vmem>>, vector<256x256xbf16>
    %c0_29 = arith.constant 0 : index
    %c0_30 = arith.constant 0 : index
    %30 = vector.load %arg5[%c0_29, %c0_30] : memref<256x128xbf16, #tpu.memory_space<vmem>>, vector<256x128xbf16>
    %cst_31 = arith.constant dense<0.000000e+00> : vector<256x128xf32>
    %31 = tpu.matmul %29, %30, %cst_31 {dimension_numbers = #tpu.dot_dimension_numbers<[1], [0], [0], [1], [0, 0, 1, 1], [], []>} : vector<256x256xbf16>, vector<256x128xbf16>, vector<256x128xf32> -> vector<256x128xf32>
    %c0_32 = arith.constant 0 : index
    %c0_33 = arith.constant 0 : index
    %32 = vector.load %arg4[%c0_32, %c0_33] : memref<256x128xf32, #tpu.memory_space<vmem>>, vector<256x128xf32>
    %c3 = arith.constant 3 : index
    %33 = memref.load %arg1[%c3] : memref<4xf32, #tpu.memory_space<smem>>
    %34 = vector.broadcast %33 : f32 to vector<256x128xf32>
    %35 = arith.mulf %34, %31 : vector<256x128xf32>
    %36 = arith.addf %32, %35 : vector<256x128xf32>
    %c0_34 = arith.constant 0 : index
    %c0_35 = arith.constant 0 : index
    %37 = vector.load %arg4[%c0_34, %c0_35] : memref<256x128xf32, #tpu.memory_space<vmem>>, vector<256x128xf32>
    tpu.vector_store %arg4[%c0_34, %c0_35], %36 {strides = array<i32>} : memref<256x128xf32, #tpu.memory_space<vmem>>, vector<256x128xf32>,
    return
  }
  func.func @transform_0(%arg0: i32) -> i32 {
    %c0_i32 = arith.constant 0 : i32
    %c0_i32_0 = arith.constant 0 : i32
    return %c0_i32 : i32
  }
  func.func @transform_1(%arg0: i32) -> (i32, i32) {
    %c0_i32 = arith.constant 0 : i32
    %c0_i32_0 = arith.constant 0 : i32
    %c0_i32_1 = arith.constant 0 : i32
    return %c0_i32, %c0_i32_0 : i32, i32
  }
  func.func @transform_2(%arg0: i32) -> (i32, i32) {
    %c0_i32 = arith.constant 0 : i32
    %c0_i32_0 = arith.constant 0 : i32
    %c0_i32_1 = arith.constant 0 : i32
    return %c0_i32, %c0_i32_0 : i32, i32
  }
  func.func @transform_3(%arg0: i32) -> (i32, i32) {
    %c0_i32 = arith.constant 0 : i32
    %c0_i32_0 = arith.constant 0 : i32
    %c0_i32_1 = arith.constant 0 : i32
    return %c0_i32, %c0_i32_0 : i32, i32
  }
}

</mosaic_0001>

<llo_original>
// kernel: poly_conv_batch.1
$region0: #{poly_conv_batch.1}
  #allocation0 [shape = 'u32[]', space=smem, size = 0x4, offset = 0x4, fixed_abs, tag = 'smem constant byte address 0x4 - core index']
  #allocation1 [shape = 'u32[144,128]{1,0:T(1,128)}', space=vmem, size = 0x12000, scoped, tag = 'internal scratch']
  #allocation2 [shape = 'bf16[256,128]{1,0:T(16,128)(2,1)}', space=vmem, size = 0x10000, scoped, tag = 'scratch operand']
  %s0 = inlined_call_operand.vmem [shape: f32[4], index: 0, kind: input, shape index: {}]
  %s1 = inlined_call_operand.vmem [shape: bf16[256,256], index: 1, kind: input, shape index: {}]
  %s2 = inlined_call_operand.vmem [shape: f32[256,128], index: 2, kind: input, shape index: {}]
  %s3 = inlined_call_operand.vmem [shape: f32[256,128], index: 3, kind: output, shape index: {}]
  %s4 = sld [smem:[#allocation0]]
  $region26: #{poly_conv_batch.1} parent=0
    _
  %s6 = ssub.s32 1, %s4
  %s7 = scalar_select 0, %s6, %s4
  $region1: #{poly_conv_batch.1} parent=0
    #allocation3 [shape = 'u8[512]{0}', space=smem, size = 0x200, scoped, tag = 'input window, operand 0, single buffered']
    #allocation4 [shape = 's32[1]{0}', space=sflag, size = 0x4, scoped, tag = 'scoped memory for poly_conv_batch.1']
    %8 = vsyncpa [#allocation4], 0
    // Predicated region
    $region2: #{poly_conv_batch.1} parent=1 // pred_check
      _
    $region3: #{poly_conv_batch.1} parent=1 // pred_check_branch
      %10 = sbr.rel (0) target = $region5
    $region4: #{poly_conv_batch.1} parent=1 // pred_region
      %s12 = ssub.s32 16, 16
      %13 = vsyncadd [#allocation4], %s12
      %s15 = sshll.u32 %s0, 4
      %s16 = int_to_ptr.vmem [resolvable:$true] %s15
      %18 = dma.vmem_to_smem %s16, 16, [#allocation3], [#allocation4]
    $region5: #{poly_conv_batch.1} parent=1 // pred_fallthru
      _
    // Predicated region
    $region6: #{poly_conv_batch.1} parent=1 // pred_check
      _
    $region7: #{poly_conv_batch.1} parent=1 // pred_check_branch
      %20 = sbr.rel (0) target = $region9
    $region8: #{poly_conv_batch.1} parent=1 // pred_region
      _
    $region9: #{poly_conv_batch.1} parent=1 // pred_fallthru
      _
    // Predicated region
    $region10: #{poly_conv_batch.1} parent=1 // pred_check
      _
    $region11: #{poly_conv_batch.1} parent=1 // pred_check_branch
      %22 = sbr.rel (0) target = $region13
    $region12: #{poly_conv_batch.1} parent=1 // pred_region
      _
    $region13: #{poly_conv_batch.1} parent=1 // pred_fallthru
      _
    // Predicated region
    $region14: #{poly_conv_batch.1} parent=1 // pred_check
      _
    $region15: #{poly_conv_batch.1} parent=1 // pred_check_branch
      %24 = sbr.rel (0) target = $region17
    $region16: #{poly_conv_batch.1} parent=1 // pred_region
      %25 = dma.done [#allocation4], 16
    $region17: #{poly_conv_batch.1} parent=1 // pred_fallthru
      _
    %26 = sfence
    %v28 = vld [vmem:[%s2] sm:$0xff]
    %v29 = vld [vmem:[%s2 + $0x8] sm:$0xff]
    %v30 = vld [vmem:[%s2 + $0x10] sm:$0xff]
    %v31 = vld [vmem:[%s2 + $0x18] sm:$0xff]
    %v32 = vld [vmem:[%s2 + $0x20] sm:$0xff]
    %v33 = vld [vmem:[%s2 + $0x28] sm:$0xff]
    %v34 = vld [vmem:[%s2 + $0x30] sm:$0xff]
    %v35 = vld [vmem:[%s2 + $0x38] sm:$0xff]
    %v36 = vld [vmem:[%s2 + $0x40] sm:$0xff]
    %v37 = vld [vmem:[%s2 + $0x48] sm:$0xff]
    %v38 = vld [vmem:[%s2 + $0x50] sm:$0xff]
    %v39 = vld [vmem:[%s2 + $0x58] sm:$0xff]
    %v40 = vld [vmem:[%s2 + $0x60] sm:$0xff]
    %v41 = vld [vmem:[%s2 + $0x68] sm:$0xff]
    %v42 = vld [vmem:[%s2 + $0x70] sm:$0xff]
    %v43 = vld [vmem:[%s2 + $0x78] sm:$0xff]
    %v44 = vld [vmem:[%s2 + $0x80] sm:$0xff]
    %v45 = vld [vmem:[%s2 + $0x88] sm:$0xff]
    %v46 = vld [vmem:[%s2 + $0x90] sm:$0xff]
    %v47 = vld [vmem:[%s2 + $0x98] sm:$0xff]
    %v48 = vld [vmem:[%s2 + $0xa0] sm:$0xff]
    %v49 = vld [vmem:[%s2 + $0xa8] sm:$0xff]
    %v50 = vld [vmem:[%s2 + $0xb0] sm:$0xff]
    %v51 = vld [vmem:[%s2 + $0xb8] sm:$0xff]
    %v52 = vld [vmem:[%s2 + $0xc0] sm:$0xff]
    %v53 = vld [vmem:[%s2 + $0xc8] sm:$0xff]
    %v54 = vld [vmem:[%s2 + $0xd0] sm:$0xff]
    %v55 = vld [vmem:[%s2 + $0xd8] sm:$0xff]
    %v56 = vld [vmem:[%s2 + $0xe0] sm:$0xff]
    %v57 = vld [vmem:[%s2 + $0xe8] sm:$0xff]
    %v58 = vld [vmem:[%s2 + $0xf0] sm:$0xff]
    %v59 = vld [vmem:[%s2 + $0xf8] sm:$0xff]
    %s60 = sld [smem:[#allocation3]]
    %v61 = vstv %s60
    %v62 = vmul.f32 %v61, %v28
    %v63 = vmul.f32 %v61, %v29
    %v64 = vmul.f32 %v61, %v30
    %v65 = vmul.f32 %v61, %v31
    %v66 = vmul.f32 %v61, %v32
    %v67 = vmul.f32 %v61, %v33
    %v68 = vmul.f32 %v61, %v34
    %v69 = vmul.f32 %v61, %v35
    %v70 = vmul.f32 %v61, %v36
    %v71 = vmul.f32 %v61, %v37
    %v72 = vmul.f32 %v61, %v38
    %v73 = vmul.f32 %v61, %v39
    %v74 = vmul.f32 %v61, %v40
    %v75 = vmul.f32 %v61, %v41
    %v76 = vmul.f32 %v61, %v42
    %v77 = vmul.f32 %v61, %v43
    %v78 = vmul.f32 %v61, %v44
    %v79 = vmul.f32 %v61, %v45
    %v80 = vmul.f32 %v61, %v46
    %v81 = vmul.f32 %v61, %v47
    %v82 = vmul.f32 %v61, %v48
    %v83 = vmul.f32 %v61, %v49
    %v84 = vmul.f32 %v61, %v50
    %v85 = vmul.f32 %v61, %v51
    %v86 = vmul.f32 %v61, %v52
    %v87 = vmul.f32 %v61, %v53
    %v88 = vmul.f32 %v61, %v54
    %v89 = vmul.f32 %v61, %v55
    %v90 = vmul.f32 %v61, %v56
    %v91 = vmul.f32 %v61, %v57
    %v92 = vmul.f32 %v61, %v58
    %v93 = vmul.f32 %v61, %v59
    %94 = vst [vmem:[%s3] sm:$0xff] %v62
    %95 = vst [vmem:[%s3 + $0x8] sm:$0xff] %v63
    %96 = vst [vmem:[%s3 + $0x10] sm:$0xff] %v64
    %97 = vst [vmem:[%s3 + $0x18] sm:$0xff] %v65
    %98 = vst [vmem:[%s3 + $0x20] sm:$0xff] %v66
    %99 = vst [vmem:[%s3 + $0x28] sm:$0xff] %v67
    %100 = vst [vmem:[%s3 + $0x30] sm:$0xff] %v68
    %101 = vst [vmem:[%s3 + $0x38] sm:$0xff] %v69
    %102 = vst [vmem:[%s3 + $0x40] sm:$0xff] %v70
    %103 = vst [vmem:[%s3 + $0x48] sm:$0xff] %v71
    %104 = vst [vmem:[%s3 + $0x50] sm:$0xff] %v72
    %105 = vst [vmem:[%s3 + $0x58] sm:$0xff] %v73
    %106 = vst [vmem:[%s3 + $0x60] sm:$0xff] %v74
    %107 = vst [vmem:[%s3 + $0x68] sm:$0xff] %v75
    %108 = vst [vmem:[%s3 + $0x70] sm:$0xff] %v76
    %109 = vst [vmem:[%s3 + $0x78] sm:$0xff] %v77
    %110 = vst [vmem:[%s3 + $0x80] sm:$0xff] %v78
    %111 = vst [vmem:[%s3 + $0x88] sm:$0xff] %v79
    %112 = vst [vmem:[%s3 + $0x90] sm:$0xff] %v80
    %113 = vst [vmem:[%s3 + $0x98] sm:$0xff] %v81
    %114 = vst [vmem:[%s3 + $0xa0] sm:$0xff] %v82
    %115 = vst [vmem:[%s3 + $0xa8] sm:$0xff] %v83
    %116 = vst [vmem:[%s3 + $0xb0] sm:$0xff] %v84
    %117 = vst [vmem:[%s3 + $0xb8] sm:$0xff] %v85
    %118 = vst [vmem:[%s3 + $0xc0] sm:$0xff] %v86
    %119 = vst [vmem:[%s3 + $0xc8] sm:$0xff] %v87
    %120 = vst [vmem:[%s3 + $0xd0] sm:$0xff] %v88
    %121 = vst [vmem:[%s3 + $0xd8] sm:$0xff] %v89
    %122 = vst [vmem:[%s3 + $0xe0] sm:$0xff] %v90
    %123 = vst [vmem:[%s3 + $0xe8] sm:$0xff] %v91
    %124 = vst [vmem:[%s3 + $0xf0] sm:$0xff] %v92
    %125 = vst [vmem:[%s3 + $0xf8] sm:$0xff] %v93
    %v126 = vpack.c.bf16 %v29, %v28
    %v127 = vpack.c.bf16 %v31, %v30
    %v128 = vpack.c.bf16 %v33, %v32
    %v129 = vpack.c.bf16 %v35, %v34
    %v130 = vpack.c.bf16 %v37, %v36
    %v131 = vpack.c.bf16 %v39, %v38
    %v132 = vpack.c.bf16 %v41, %v40
    %v133 = vpack.c.bf16 %v43, %v42
    %v134 = vpack.c.bf16 %v45, %v44
    %v135 = vpack.c.bf16 %v47, %v46
    %v136 = vpack.c.bf16 %v49, %v48
    %v137 = vpack.c.bf16 %v51, %v50
    %v138 = vpack.c.bf16 %v53, %v52
    %v139 = vpack.c.bf16 %v55, %v54
    %v140 = vpack.c.bf16 %v57, %v56
    %v141 = vpack.c.bf16 %v59, %v58
    %142 = vst [vmem:[#allocation2] sm:$0xff] %v126
    %143 = vst [vmem:[#allocation2 + $0x8] sm:$0xff] %v127
    %144 = vst [vmem:[#allocation2 + $0x10] sm:$0xff] %v128
    %145 = vst [vmem:[#allocation2 + $0x18] sm:$0xff] %v129
    %146 = vst [vmem:[#allocation2 + $0x20] sm:$0xff] %v130
    %147 = vst [vmem:[#allocation2 + $0x28] sm:$0xff] %v131
    %148 = vst [vmem:[#allocation2 + $0x30] sm:$0xff] %v132
    %149 = vst [vmem:[#allocation2 + $0x38] sm:$0xff] %v133
    %150 = vst [vmem:[#allocation2 + $0x40] sm:$0xff] %v134
    %151 = vst [vmem:[#allocation2 + $0x48] sm:$0xff] %v135
    %152 = vst [vmem:[#allocation2 + $0x50] sm:$0xff] %v136
    %153 = vst [vmem:[#allocation2 + $0x58] sm:$0xff] %v137
    %154 = vst [vmem:[#allocation2 + $0x60] sm:$0xff] %v138
    %155 = vst [vmem:[#allocation2 + $0x68] sm:$0xff] %v139
    %156 = vst [vmem:[#allocation2 + $0x70] sm:$0xff] %v140
    %157 = vst [vmem:[#allocation2 + $0x78] sm:$0xff] %v141
    %v158 = vld [vmem:[%s1] sm:$0xff]
    %v159 = vld [vmem:[%s1 + $0x8] sm:$0xff]
    %v160 = vld [vmem:[%s1 + $0x10] sm:$0xff]
    %v161 = vld [vmem:[%s1 + $0x18] sm:$0xff]
    %v162 = vld [vmem:[%s1 + $0x20] sm:$0xff]
    %v163 = vld [vmem:[%s1 + $0x28] sm:$0xff]
    %v164 = vld [vmem:[%s1 + $0x30] sm:$0xff]
    %v165 = vld [vmem:[%s1 + $0x38] sm:$0xff]
    %v166 = vld [vmem:[%s1 + $0x40] sm:$0xff]
    %v167 = vld [vmem:[%s1 + $0x48] sm:$0xff]
    %v168 = vld [vmem:[%s1 + $0x50] sm:$0xff]
    %v169 = vld [vmem:[%s1 + $0x58] sm:$0xff]
    %v170 = vld [vmem:[%s1 + $0x60] sm:$0xff]
    %v171 = vld [vmem:[%s1 + $0x68] sm:$0xff]
    %v172 = vld [vmem:[%s1 + $0x70] sm:$0xff]
    %v173 = vld [vmem:[%s1 + $0x78] sm:$0xff]
    %v174 = vld [vmem:[%s1 + $0x80] sm:$0xff]
    %v175 = vld [vmem:[%s1 + $0x88] sm:$0xff]
    %v176 = vld [vmem:[%s1 + $0x90] sm:$0xff]
    %v177 = vld [vmem:[%s1 + $0x98] sm:$0xff]
    %v178 = vld [vmem:[%s1 + $0xa0] sm:$0xff]
    %v179 = vld [vmem:[%s1 + $0xa8] sm:$0xff]
    %v180 = vld [vmem:[%s1 + $0xb0] sm:$0xff]
    %v181 = vld [vmem:[%s1 + $0xb8] sm:$0xff]
    %v182 = vld [vmem:[%s1 + $0xc0] sm:$0xff]
    %v183 = vld [vmem:[%s1 + $0xc8] sm:$0xff]
    %v184 = vld [vmem:[%s1 + $0xd0] sm:$0xff]
    %v185 = vld [vmem:[%s1 + $0xd8] sm:$0xff]
    %v186 = vld [vmem:[%s1 + $0xe0] sm:$0xff]
    %v187 = vld [vmem:[%s1 + $0xe8] sm:$0xff]
    %v188 = vld [vmem:[%s1 + $0xf0] sm:$0xff]
    %v189 = vld [vmem:[%s1 + $0xf8] sm:$0xff]
    %v190 = vld [vmem:[#allocation2] sm:$0xff]
    %v191 = vld [vmem:[#allocation2 + $0x8] sm:$0xff]
    %v192 = vld [vmem:[#allocation2 + $0x10] sm:$0xff]
    %v193 = vld [vmem:[#allocation2 + $0x18] sm:$0xff]
    %v194 = vld [vmem:[#allocation2 + $0x20] sm:$0xff]
    %v195 = vld [vmem:[#allocation2 + $0x28] sm:$0xff]
    %v196 = vld [vmem:[#allocation2 + $0x30] sm:$0xff]
    %v197 = vld [vmem:[#allocation2 + $0x38] sm:$0xff]
    %v198 = vld [vmem:[#allocation2 + $0x40] sm:$0xff]
    %v199 = vld [vmem:[#allocation2 + $0x48] sm:$0xff]
    %v200 = vld [vmem:[#allocation2 + $0x50] sm:$0xff]
    %v201 = vld [vmem:[#allocation2 + $0x58] sm:$0xff]
    %v202 = vld [vmem:[#allocation2 + $0x60] sm:$0xff]
    %v203 = vld [vmem:[#allocation2 + $0x68] sm:$0xff]
    %v204 = vld [vmem:[#allocation2 + $0x70] sm:$0xff]
    %v205 = vld [vmem:[#allocation2 + $0x78] sm:$0xff]
    %v238 = vunpack.c.l.b16 %v158
    %v239 = vunpack.c.h.b16 %v158
    %v240 = vunpack.c.l.b16 %v159
    %v241 = vunpack.c.h.b16 %v159
    %v242 = vunpack.c.l.b16 %v160
    %v243 = vunpack.c.h.b16 %v160
    %v244 = vunpack.c.l.b16 %v161
    %v245 = vunpack.c.h.b16 %v161
    %v246 = vunpack.c.l.b16 %v162
    %v247 = vunpack.c.h.b16 %v162
    %v248 = vunpack.c.l.b16 %v163
    %v249 = vunpack.c.h.b16 %v163
    %v250 = vunpack.c.l.b16 %v164
    %v251 = vunpack.c.h.b16 %v164
    %v252 = vunpack.c.l.b16 %v165
    %v253 = vunpack.c.h.b16 %v165
    %v254 = vunpack.c.l.b16 %v166
    %v255 = vunpack.c.h.b16 %v166
    %v256 = vunpack.c.l.b16 %v167
    %v257 = vunpack.c.h.b16 %v167
    %v258 = vunpack.c.l.b16 %v168
    %v259 = vunpack.c.h.b16 %v168
    %v260 = vunpack.c.l.b16 %v169
    %v261 = vunpack.c.h.b16 %v169
    %v262 = vunpack.c.l.b16 %v170
    %v263 = vunpack.c.h.b16 %v170
    %v264 = vunpack.c.l.b16 %v171
    %v265 = vunpack.c.h.b16 %v171
    %v266 = vunpack.c.l.b16 %v172
    %v267 = vunpack.c.h.b16 %v172
    %v268 = vunpack.c.l.b16 %v173
    %v269 = vunpack.c.h.b16 %v173
    %v270 = vunpack.c.l.b16 %v174
    %v271 = vunpack.c.h.b16 %v174
    %v272 = vunpack.c.l.b16 %v175
    %v273 = vunpack.c.h.b16 %v175
    %v274 = vunpack.c.l.b16 %v176
    %v275 = vunpack.c.h.b16 %v176
    %v276 = vunpack.c.l.b16 %v177
    %v277 = vunpack.c.h.b16 %v177
    %v278 = vunpack.c.l.b16 %v178
    %v279 = vunpack.c.h.b16 %v178
    %v280 = vunpack.c.l.b16 %v179
    %v281 = vunpack.c.h.b16 %v179
    %v282 = vunpack.c.l.b16 %v180
    %v283 = vunpack.c.h.b16 %v180
    %v284 = vunpack.c.l.b16 %v181
    %v285 = vunpack.c.h.b16 %v181
    %v286 = vunpack.c.l.b16 %v182
    %v287 = vunpack.c.h.b16 %v182
    %v288 = vunpack.c.l.b16 %v183
    %v289 = vunpack.c.h.b16 %v183
    %v290 = vunpack.c.l.b16 %v184
    %v291 = vunpack.c.h.b16 %v184
    %v292 = vunpack.c.l.b16 %v185
    %v293 = vunpack.c.h.b16 %v185
    %v294 = vunpack.c.l.b16 %v186
    %v295 = vunpack.c.h.b16 %v186
    %v296 = vunpack.c.l.b16 %v187
    %v297 = vunpack.c.h.b16 %v187
    %v298 = vunpack.c.l.b16 %v188
    %v299 = vunpack.c.h.b16 %v188
    %v300 = vunpack.c.l.b16 %v189
    %v301 = vunpack.c.h.b16 %v189
    %v302 = vpack.c.b16 %v240, %v238
    %v303 = vpack.c.b16 %v241, %v239
    %v304 = vpack.c.b16 %v244, %v242
    %v305 = vpack.c.b16 %v245, %v243
    %v306 = vpack.c.b16 %v248, %v246
    %v307 = vpack.c.b16 %v249, %v247
    %v308 = vpack.c.b16 %v252, %v250
    %v309 = vpack.c.b16 %v253, %v251
    %v310 = vpack.c.b16 %v256, %v254
    %v311 = vpack.c.b16 %v257, %v255
    %v312 = vpack.c.b16 %v260, %v258
    %v313 = vpack.c.b16 %v261, %v259
    %v314 = vpack.c.b16 %v264, %v262
    %v315 = vpack.c.b16 %v265, %v263
    %v316 = vpack.c.b16 %v268, %v266
    %v317 = vpack.c.b16 %v269, %v267
    %v318 = vpack.c.b16 %v272, %v270
    %v319 = vpack.c.b16 %v273, %v271
    %v320 = vpack.c.b16 %v276, %v274
    %v321 = vpack.c.b16 %v277, %v275
    %v322 = vpack.c.b16 %v280, %v278
    %v323 = vpack.c.b16 %v281, %v279
    %v324 = vpack.c.b16 %v284, %v282
    %v325 = vpack.c.b16 %v285, %v283
    %v326 = vpack.c.b16 %v288, %v286
    %v327 = vpack.c.b16 %v289, %v287
    %v328 = vpack.c.b16 %v292, %v290
    %v329 = vpack.c.b16 %v293, %v291
    %v330 = vpack.c.b16 %v296, %v294
    %v331 = vpack.c.b16 %v297, %v295
    %v332 = vpack.c.b16 %v300, %v298
    %v333 = vpack.c.b16 %v301, %v299
    %366 = vmatprep.subr.bf16.mxu0 0
    %367 = vmatpush1.bf16.msra.mxu0 %v190
    %368 = vmatprep.subr.bf16.mxu0 0
    %369 = vmatpush1.bf16.msra.mxu0 %v191
    %370 = vmatprep.subr.bf16.mxu0 0
    %371 = vmatpush1.bf16.msra.mxu0 %v192
    %372 = vmatprep.subr.bf16.mxu0 0
    %373 = vmatpush1.bf16.msra.mxu0 %v193
    %374 = vmatprep.subr.bf16.mxu0 0
    %375 = vmatpush1.bf16.msra.mxu0 %v194
    %376 = vmatprep.subr.bf16.mxu0 0
    %377 = vmatpush1.bf16.msra.mxu0 %v195
    %378 = vmatprep.subr.bf16.mxu0 0
    %379 = vmatpush1.bf16.msra.mxu0 %v196
    %380 = vmatprep.subr.bf16.mxu0 0
    %381 = vmatpush1.bf16.msra.mxu0 %v197
    %382 = vmatprep.subr.bf16.mxu0 0
    %383 = vmatpush1.bf16.msra.mxu0 %v198
    %384 = vmatprep.subr.bf16.mxu0 0
    %385 = vmatpush1.bf16.msra.mxu0 %v199
    %386 = vmatprep.subr.bf16.mxu0 0
    %387 = vmatpush1.bf16.msra.mxu0 %v200
    %388 = vmatprep.subr.bf16.mxu0 0
    %389 = vmatpush1.bf16.msra.mxu0 %v201
    %390 = vmatprep.subr.bf16.mxu0 0
    %391 = vmatpush1.bf16.msra.mxu0 %v202
    %392 = vmatprep.subr.bf16.mxu0 0
    %393 = vmatpush1.bf16.msra.mxu0 %v203
    %394 = vmatprep.subr.bf16.mxu0 0
    %395 = vmatpush1.bf16.msra.mxu0 %v204
    %396 = vmatprep.subr.bf16.mxu0 0
    %397 = vmatpush1.bf16.msra.mxu0 %v205
    %398 = vmatprep.mubr.bf16.mxu0 %v303
    %399 = vmatmul.mubr.bf16.gmra.mrb[0].mxu0 %v302
    %v400 = vpop.f32.mrb[0].mxu0
    %v401 = vadd.f32 0.0, %v400
    %v402 = vpop.f32.mrb[0].mxu0
    %v403 = vpop.f32.mrb[0].mxu0
    %v404 = vadd.f32 0.0, %v403
    %v405 = vpop.f32.mrb[0].mxu0
    %406 = vmatprep.mubr.bf16.mxu0 %v305
    %407 = vmatmul.mubr.bf16.gmra.mrb[0].mxu0 %v304
    %v408 = vpop.f32.mrb[0].mxu0
    %v409 = vadd.f32 0.0, %v408
    %v410 = vpop.f32.mrb[0].mxu0
    %v411 = vpop.f32.mrb[0].mxu0
    %v412 = vadd.f32 0.0, %v411
    %v413 = vpop.f32.mrb[0].mxu0
    %414 = vmatprep.mubr.bf16.mxu0 %v307
    %415 = vmatmul.mubr.bf16.gmra.mrb[0].mxu0 %v306
    %v416 = vpop.f32.mrb[0].mxu0
    %v417 = vadd.f32 0.0, %v416
    %v418 = vpop.f32.mrb[0].mxu0
    %v419 = vpop.f32.mrb[0].mxu0
    %v420 = vadd.f32 0.0, %v419
    %v421 = vpop.f32.mrb[0].mxu0
    %422 = vmatprep.mubr.bf16.mxu0 %v309
    %423 = vmatmul.mubr.bf16.gmra.mrb[0].mxu0 %v308
    %v424 = vpop.f32.mrb[0].mxu0
    %v425 = vadd.f32 0.0, %v424
    %v426 = vpop.f32.mrb[0].mxu0
    %v427 = vpop.f32.mrb[0].mxu0
    %v428 = vadd.f32 0.0, %v427
    %v429 = vpop.f32.mrb[0].mxu0
    %430 = vmatprep.mubr.bf16.mxu0 %v311
    %431 = vmatmul.mubr.bf16.gmra.mrb[0].mxu0 %v310
    %v432 = vpop.f32.mrb[0].mxu0
    %v433 = vadd.f32 0.0, %v432
    %v434 = vpop.f32.mrb[0].mxu0
    %v435 = vpop.f32.mrb[0].mxu0
    %v436 = vadd.f32 0.0, %v435
    %v437 = vpop.f32.mrb[0].mxu0
    %438 = vmatprep.mubr.bf16.mxu0 %v313
    %439 = vmatmul.mubr.bf16.gmra.mrb[0].mxu0 %v312
    %v440 = vpop.f32.mrb[0].mxu0
    %v441 = vadd.f32 0.0, %v440
    %v442 = vpop.f32.mrb[0].mxu0
    %v443 = vpop.f32.mrb[0].mxu0
    %v444 = vadd.f32 0.0, %v443
    %v445 = vpop.f32.mrb[0].mxu0
    %446 = vmatprep.mubr.bf16.mxu0 %v315
    %447 = vmatmul.mubr.bf16.gmra.mrb[0].mxu0 %v314
    %v448 = vpop.f32.mrb[0].mxu0
    %v449 = vadd.f32 0.0, %v448
    %v450 = vpop.f32.mrb[0].mxu0
    %v451 = vpop.f32.mrb[0].mxu0
    %v452 = vadd.f32 0.0, %v451
    %v453 = vpop.f32.mrb[0].mxu0
    %454 = vmatprep.mubr.bf16.mxu0 %v317
    %455 = vmatmul.mubr.bf16.gmra.mrb[0].mxu0 %v316
    %v456 = vpop.f32.mrb[0].mxu0
    %v457 = vadd.f32 0.0, %v456
    %v458 = vpop.f32.mrb[0].mxu0
    %v459 = vpop.f32.mrb[0].mxu0
    %v460 = vadd.f32 0.0, %v459
    %v461 = vpop.f32.mrb[0].mxu0
    %462 = vmatprep.mubr.bf16.mxu0 %v319
    %463 = vmatmul.mubr.bf16.gmra.mrb[0].mxu0 %v318
    %v464 = vpop.f32.mrb[0].mxu0
    %v465 = vadd.f32 0.0, %v464
    %v466 = vpop.f32.mrb[0].mxu0
    %v467 = vpop.f32.mrb[0].mxu0
    %v468 = vadd.f32 0.0, %v467
    %v469 = vpop.f32.mrb[0].mxu0
    %470 = vmatprep.mubr.bf16.mxu0 %v321
    %471 = vmatmul.mubr.bf16.gmra.mrb[0].mxu0 %v320
    %v472 = vpop.f32.mrb[0].mxu0
    %v473 = vadd.f32 0.0, %v472
    %v474 = vpop.f32.mrb[0].mxu0
    %v475 = vpop.f32.mrb[0].mxu0
    %v476 = vadd.f32 0.0, %v475
    %v477 = vpop.f32.mrb[0].mxu0
    %478 = vmatprep.mubr.bf16.mxu0 %v323
    %479 = vmatmul.mubr.bf16.gmra.mrb[0].mxu0 %v322
    %v480 = vpop.f32.mrb[0].mxu0
    %v481 = vadd.f32 0.0, %v480
    %v482 = vpop.f32.mrb[0].mxu0
    %v483 = vpop.f32.mrb[0].mxu0
    %v484 = vadd.f32 0.0, %v483
    %v485 = vpop.f32.mrb[0].mxu0
    %486 = vmatprep.mubr.bf16.mxu0 %v325
    %487 = vmatmul.mubr.bf16.gmra.mrb[0].mxu0 %v324
    %v488 = vpop.f32.mrb[0].mxu0
    %v489 = vadd.f32 0.0, %v488
    %v490 = vpop.f32.mrb[0].mxu0
    %v491 = vpop.f32.mrb[0].mxu0
    %v492 = vadd.f32 0.0, %v491
    %v493 = vpop.f32.mrb[0].mxu0
    %494 = vmatprep.mubr.bf16.mxu0 %v327
    %495 = vmatmul.mubr.bf16.gmra.mrb[0].mxu0 %v326
    %v496 = vpop.f32.mrb[0].mxu0
    %v497 = vadd.f32 0.0, %v496
    %v498 = vpop.f32.mrb[0].mxu0
    %v499 = vpop.f32.mrb[0].mxu0
    %v500 = vadd.f32 0.0, %v499
    %v501 = vpop.f32.mrb[0].mxu0
    %502 = vmatprep.mubr.bf16.mxu0 %v329
    %503 = vmatmul.mubr.bf16.gmra.mrb[0].mxu0 %v328
    %v504 = vpop.f32.mrb[0].mxu0
    %v505 = vadd.f32 0.0, %v504
    %v506 = vpop.f32.mrb[0].mxu0
    %v507 = vpop.f32.mrb[0].mxu0
    %v508 = vadd.f32 0.0, %v507
    %v509 = vpop.f32.mrb[0].mxu0
    %510 = vmatprep.mubr.bf16.mxu0 %v331
    %511 = vmatmul.mubr.bf16.gmra.mrb[0].mxu0 %v330
    %v512 = vpop.f32.mrb[0].mxu0
    %v513 = vadd.f32 0.0, %v512
    %v514 = vpop.f32.mrb[0].mxu0
    %v515 = vpop.f32.mrb[0].mxu0
    %v516 = vadd.f32 0.0, %v515
    %v517 = vpop.f32.mrb[0].mxu0
    %518 = vmatprep.mubr.bf16.mxu0 %v333
    %519 = vmatmul.mubr.bf16.gmra.mrb[0].mxu0 %v332
    %v520 = vpop.f32.mrb[0].mxu0
    %v521 = vadd.f32 0.0, %v520
    %v522 = vpop.f32.mrb[0].mxu0
    %v523 = vpop.f32.mrb[0].mxu0
    %v524 = vadd.f32 0.0, %v523
    %v525 = vpop.f32.mrb[0].mxu0
    %526 = vdwg.mxu0
    %v527 = vld [vmem:[%s3] sm:$0xff]
    %v528 = vld [vmem:[%s3 + $0x8] sm:$0xff]
    %v529 = vld [vmem:[%s3 + $0x10] sm:$0xff]
    %v530 = vld [vmem:[%s3 + $0x18] sm:$0xff]
    %v531 = vld [vmem:[%s3 + $0x20] sm:$0xff]
    %v532 = vld [vmem:[%s3 + $0x28] sm:$0xff]
    %v533 = vld [vmem:[%s3 + $0x30] sm:$0xff]
    %v534 = vld [vmem:[%s3 + $0x38] sm:$0xff]
    %v535 = vld [vmem:[%s3 + $0x40] sm:$0xff]
    %v536 = vld [vmem:[%s3 + $0x48] sm:$0xff]
    %v537 = vld [vmem:[%s3 + $0x50] sm:$0xff]
    %v538 = vld [vmem:[%s3 + $0x58] sm:$0xff]
    %v539 = vld [vmem:[%s3 + $0x60] sm:$0xff]
    %v540 = vld [vmem:[%s3 + $0x68] sm:$0xff]
    %v541 = vld [vmem:[%s3 + $0x70] sm:$0xff]
    %v542 = vld [vmem:[%s3 + $0x78] sm:$0xff]
    %v543 = vld [vmem:[%s3 + $0x80] sm:$0xff]
    %v544 = vld [vmem:[%s3 + $0x88] sm:$0xff]
    %v545 = vld [vmem:[%s3 + $0x90] sm:$0xff]
    %v546 = vld [vmem:[%s3 + $0x98] sm:$0xff]
    %v547 = vld [vmem:[%s3 + $0xa0] sm:$0xff]
    %v548 = vld [vmem:[%s3 + $0xa8] sm:$0xff]
    %v549 = vld [vmem:[%s3 + $0xb0] sm:$0xff]
    %v550 = vld [vmem:[%s3 + $0xb8] sm:$0xff]
    %v551 = vld [vmem:[%s3 + $0xc0] sm:$0xff]
    %v552 = vld [vmem:[%s3 + $0xc8] sm:$0xff]
    %v553 = vld [vmem:[%s3 + $0xd0] sm:$0xff]
    %v554 = vld [vmem:[%s3 + $0xd8] sm:$0xff]
    %v555 = vld [vmem:[%s3 + $0xe0] sm:$0xff]
    %v556 = vld [vmem:[%s3 + $0xe8] sm:$0xff]
    %v557 = vld [vmem:[%s3 + $0xf0] sm:$0xff]
    %v558 = vld [vmem:[%s3 + $0xf8] sm:$0xff]
    %s559 = sld [smem:[#allocation3 + $0x1]]
    %v560 = vstv %s559
    %v561 = vmul.f32 %v560, %v401
    %v562 = vmul.f32 %v560, %v404
    %v563 = vmul.f32 %v560, %v409
    %v564 = vmul.f32 %v560, %v412
    %v565 = vmul.f32 %v560, %v417
    %v566 = vmul.f32 %v560, %v420
    %v567 = vmul.f32 %v560, %v425
    %v568 = vmul.f32 %v560, %v428
    %v569 = vmul.f32 %v560, %v433
    %v570 = vmul.f32 %v560, %v436
    %v571 = vmul.f32 %v560, %v441
    %v572 = vmul.f32 %v560, %v444
    %v573 = vmul.f32 %v560, %v449
    %v574 = vmul.f32 %v560, %v452
    %v575 = vmul.f32 %v560, %v457
    %v576 = vmul.f32 %v560, %v460
    %v577 = vmul.f32 %v560, %v465
    %v578 = vmul.f32 %v560, %v468
    %v579 = vmul.f32 %v560, %v473
    %v580 = vmul.f32 %v560, %v476
    %v581 = vmul.f32 %v560, %v481
    %v582 = vmul.f32 %v560, %v484
    %v583 = vmul.f32 %v560, %v489
    %v584 = vmul.f32 %v560, %v492
    %v585 = vmul.f32 %v560, %v497
    %v586 = vmul.f32 %v560, %v500
    %v587 = vmul.f32 %v560, %v505
    %v588 = vmul.f32 %v560, %v508
    %v589 = vmul.f32 %v560, %v513
    %v590 = vmul.f32 %v560, %v516
    %v591 = vmul.f32 %v560, %v521
    %v592 = vmul.f32 %v560, %v524
    %v593 = vadd.f32 %v527, %v561
    %v594 = vadd.f32 %v528, %v562
    %v595 = vadd.f32 %v529, %v563
    %v596 = vadd.f32 %v530, %v564
    %v597 = vadd.f32 %v531, %v565
    %v598 = vadd.f32 %v532, %v566
    %v599 = vadd.f32 %v533, %v567
    %v600 = vadd.f32 %v534, %v568
    %v601 = vadd.f32 %v535, %v569
    %v602 = vadd.f32 %v536, %v570
    %v603 = vadd.f32 %v537, %v571
    %v604 = vadd.f32 %v538, %v572
    %v605 = vadd.f32 %v539, %v573
    %v606 = vadd.f32 %v540, %v574
    %v607 = vadd.f32 %v541, %v575
    %v608 = vadd.f32 %v542, %v576
    %v609 = vadd.f32 %v543, %v577
    %v610 = vadd.f32 %v544, %v578
    %v611 = vadd.f32 %v545, %v579
    %v612 = vadd.f32 %v546, %v580
    %v613 = vadd.f32 %v547, %v581
    %v614 = vadd.f32 %v548, %v582
    %v615 = vadd.f32 %v549, %v583
    %v616 = vadd.f32 %v550, %v584
    %v617 = vadd.f32 %v551, %v585
    %v618 = vadd.f32 %v552, %v586
    %v619 = vadd.f32 %v553, %v587
    %v620 = vadd.f32 %v554, %v588
    %v621 = vadd.f32 %v555, %v589
    %v622 = vadd.f32 %v556, %v590
    %v623 = vadd.f32 %v557, %v591
    %v624 = vadd.f32 %v558, %v592
    %625 = vst [vmem:[%s3] sm:$0xff] %v593
    %626 = vst [vmem:[%s3 + $0x8] sm:$0xff] %v594
    %627 = vst [vmem:[%s3 + $0x10] sm:$0xff] %v595
    %628 = vst [vmem:[%s3 + $0x18] sm:$0xff] %v596
    %629 = vst [vmem:[%s3 + $0x20] sm:$0xff] %v597
    %630 = vst [vmem:[%s3 + $0x28] sm:$0xff] %v598
    %631 = vst [vmem:[%s3 + $0x30] sm:$0xff] %v599
    %632 = vst [vmem:[%s3 + $0x38] sm:$0xff] %v600
    %633 = vst [vmem:[%s3 + $0x40] sm:$0xff] %v601
    %634 = vst [vmem:[%s3 + $0x48] sm:$0xff] %v602
    %635 = vst [vmem:[%s3 + $0x50] sm:$0xff] %v603
    %636 = vst [vmem:[%s3 + $0x58] sm:$0xff] %v604
    %637 = vst [vmem:[%s3 + $0x60] sm:$0xff] %v605
    %638 = vst [vmem:[%s3 + $0x68] sm:$0xff] %v606
    %639 = vst [vmem:[%s3 + $0x70] sm:$0xff] %v607
    %640 = vst [vmem:[%s3 + $0x78] sm:$0xff] %v608
    %641 = vst [vmem:[%s3 + $0x80] sm:$0xff] %v609
    %642 = vst [vmem:[%s3 + $0x88] sm:$0xff] %v610
    %643 = vst [vmem:[%s3 + $0x90] sm:$0xff] %v611
    %644 = vst [vmem:[%s3 + $0x98] sm:$0xff] %v612
    %645 = vst [vmem:[%s3 + $0xa0] sm:$0xff] %v613
    %646 = vst [vmem:[%s3 + $0xa8] sm:$0xff] %v614
    %647 = vst [vmem:[%s3 + $0xb0] sm:$0xff] %v615
    %648 = vst [vmem:[%s3 + $0xb8] sm:$0xff] %v616
    %649 = vst [vmem:[%s3 + $0xc0] sm:$0xff] %v617
    %650 = vst [vmem:[%s3 + $0xc8] sm:$0xff] %v618
    %651 = vst [vmem:[%s3 + $0xd0] sm:$0xff] %v619
    %652 = vst [vmem:[%s3 + $0xd8] sm:$0xff] %v620
    %653 = vst [vmem:[%s3 + $0xe0] sm:$0xff] %v621
    %654 = vst [vmem:[%s3 + $0xe8] sm:$0xff] %v622
    %655 = vst [vmem:[%s3 + $0xf0] sm:$0xff] %v623
    %656 = vst [vmem:[%s3 + $0xf8] sm:$0xff] %v624
    %v657 = vpack.c.bf16 %v404, %v401
    %v658 = vpack.c.bf16 %v412, %v409
    %v659 = vpack.c.bf16 %v420, %v417
    %v660 = vpack.c.bf16 %v428, %v425
    %v661 = vpack.c.bf16 %v436, %v433
    %v662 = vpack.c.bf16 %v444, %v441
    %v663 = vpack.c.bf16 %v452, %v449
    %v664 = vpack.c.bf16 %v460, %v457
    %v665 = vpack.c.bf16 %v468, %v465
    %v666 = vpack.c.bf16 %v476, %v473
    %v667 = vpack.c.bf16 %v484, %v481
    %v668 = vpack.c.bf16 %v492, %v489
    %v669 = vpack.c.bf16 %v500, %v497
    %v670 = vpack.c.bf16 %v508, %v505
    %v671 = vpack.c.bf16 %v516, %v513
    %v672 = vpack.c.bf16 %v524, %v521
    %673 = vst [vmem:[#allocation2] sm:$0xff] %v657
    %674 = vst [vmem:[#allocation2 + $0x8] sm:$0xff] %v658
    %675 = vst [vmem:[#allocation2 + $0x10] sm:$0xff] %v659
    %676 = vst [vmem:[#allocation2 + $0x18] sm:$0xff] %v660
    %677 = vst [vmem:[#allocation2 + $0x20] sm:$0xff] %v661
    %678 = vst [vmem:[#allocation2 + $0x28] sm:$0xff] %v662
    %679 = vst [vmem:[#allocation2 + $0x30] sm:$0xff] %v663
    %680 = vst [vmem:[#allocation2 + $0x38] sm:$0xff] %v664
    %681 = vst [vmem:[#allocation2 + $0x40] sm:$0xff] %v665
    %682 = vst [vmem:[#allocation2 + $0x48] sm:$0xff] %v666
    %683 = vst [vmem:[#allocation2 + $0x50] sm:$0xff] %v667
    %684 = vst [vmem:[#allocation2 + $0x58] sm:$0xff] %v668
    %685 = vst [vmem:[#allocation2 + $0x60] sm:$0xff] %v669
    %686 = vst [vmem:[#allocation2 + $0x68] sm:$0xff] %v670
    %687 = vst [vmem:[#allocation2 + $0x70] sm:$0xff] %v671
    %688 = vst [vmem:[#allocation2 + $0x78] sm:$0xff] %v672
    %v689 = vld [vmem:[%s1] sm:$0xff]
    %v690 = vld [vmem:[%s1 + $0x8] sm:$0xff]
    %v691 = vld [vmem:[%s1 + $0x10] sm:$0xff]
    %v692 = vld [vmem:[%s1 + $0x18] sm:$0xff]
    %v693 = vld [vmem:[%s1 + $0x20] sm:$0xff]
    %v694 = vld [vmem:[%s1 + $0x28] sm:$0xff]
    %v695 = vld [vmem:[%s1 + $0x30] sm:$0xff]
    %v696 = vld [vmem:[%s1 + $0x38] sm:$0xff]
    %v697 = vld [vmem:[%s1 + $0x40] sm:$0xff]
    %v698 = vld [vmem:[%s1 + $0x48] sm:$0xff]
    %v699 = vld [vmem:[%s1 + $0x50] sm:$0xff]
    %v700 = vld [vmem:[%s1 + $0x58] sm:$0xff]
    %v701 = vld [vmem:[%s1 + $0x60] sm:$0xff]
    %v702 = vld [vmem:[%s1 + $0x68] sm:$0xff]
    %v703 = vld [vmem:[%s1 + $0x70] sm:$0xff]
    %v704 = vld [vmem:[%s1 + $0x78] sm:$0xff]
    %v705 = vld [vmem:[%s1 + $0x80] sm:$0xff]
    %v706 = vld [vmem:[%s1 + $0x88] sm:$0xff]
    %v707 = vld [vmem:[%s1 + $0x90] sm:$0xff]
    %v708 = vld [vmem:[%s1 + $0x98] sm:$0xff]
    %v709 = vld [vmem:[%s1 + $0xa0] sm:$0xff]
    %v710 = vld [vmem:[%s1 + $0xa8] sm:$0xff]
    %v711 = vld [vmem:[%s1 + $0xb0] sm:$0xff]
    %v712 = vld [vmem:[%s1 + $0xb8] sm:$0xff]
    %v713 = vld [vmem:[%s1 + $0xc0] sm:$0xff]
    %v714 = vld [vmem:[%s1 + $0xc8] sm:$0xff]
    %v715 = vld [vmem:[%s1 + $0xd0] sm:$0xff]
    %v716 = vld [vmem:[%s1 + $0xd8] sm:$0xff]
    %v717 = vld [vmem:[%s1 + $0xe0] sm:$0xff]
    %v718 = vld [vmem:[%s1 + $0xe8] sm:$0xff]
    %v719 = vld [vmem:[%s1 + $0xf0] sm:$0xff]
    %v720 = vld [vmem:[%s1 + $0xf8] sm:$0xff]
    %v721 = vld [vmem:[#allocation2] sm:$0xff]
    %v722 = vld [vmem:[#allocation2 + $0x8] sm:$0xff]
    %v723 = vld [vmem:[#allocation2 + $0x10] sm:$0xff]
    %v724 = vld [vmem:[#allocation2 + $0x18] sm:$0xff]
    %v725 = vld [vmem:[#allocation2 + $0x20] sm:$0xff]
    %v726 = vld [vmem:[#allocation2 + $0x28] sm:$0xff]
    %v727 = vld [vmem:[#allocation2 + $0x30] sm:$0xff]
    %v728 = vld [vmem:[#allocation2 + $0x38] sm:$0xff]
    %v729 = vld [vmem:[#allocation2 + $0x40] sm:$0xff]
    %v730 = vld [vmem:[#allocation2 + $0x48] sm:$0xff]
    %v731 = vld [vmem:[#allocation2 + $0x50] sm:$0xff]
    %v732 = vld [vmem:[#allocation2 + $0x58] sm:$0xff]
    %v733 = vld [vmem:[#allocation2 + $0x60] sm:$0xff]
    %v734 = vld [vmem:[#allocation2 + $0x68] sm:$0xff]
    %v735 = vld [vmem:[#allocation2 + $0x70] sm:$0xff]
    %v736 = vld [vmem:[#allocation2 + $0x78] sm:$0xff]
    %v769 = vunpack.c.l.b16 %v689
    %v770 = vunpack.c.h.b16 %v689
    %v771 = vunpack.c.l.b16 %v690
    %v772 = vunpack.c.h.b16 %v690
    %v773 = vunpack.c.l.b16 %v691
    %v774 = vunpack.c.h.b16 %v691
    %v775 = vunpack.c.l.b16 %v692
    %v776 = vunpack.c.h.b16 %v692
    %v777 = vunpack.c.l.b16 %v693
    %v778 = vunpack.c.h.b16 %v693
    %v779 = vunpack.c.l.b16 %v694
    %v780 = vunpack.c.h.b16 %v694
    %v781 = vunpack.c.l.b16 %v695
    %v782 = vunpack.c.h.b16 %v695
    %v783 = vunpack.c.l.b16 %v696
    %v784 = vunpack.c.h.b16 %v696
    %v785 = vunpack.c.l.b16 %v697
    %v786 = vunpack.c.h.b16 %v697
    %v787 = vunpack.c.l.b16 %v698
    %v788 = vunpack.c.h.b16 %v698
    %v789 = vunpack.c.l.b16 %v699
    %v790 = vunpack.c.h.b16 %v699
    %v791 = vunpack.c.l.b16 %v700
    %v792 = vunpack.c.h.b16 %v700
    %v793 = vunpack.c.l.b16 %v701
    %v794 = vunpack.c.h.b16 %v701
    %v795 = vunpack.c.l.b16 %v702
    %v796 = vunpack.c.h.b16 %v702
    %v797 = vunpack.c.l.b16 %v703
    %v798 = vunpack.c.h.b16 %v703
    %v799 = vunpack.c.l.b16 %v704
    %v800 = vunpack.c.h.b16 %v704
    %v801 = vunpack.c.l.b16 %v705
    %v802 = vunpack.c.h.b16 %v705
    %v803 = vunpack.c.l.b16 %v706
    %v804 = vunpack.c.h.b16 %v706
    %v805 = vunpack.c.l.b16 %v707
    %v806 = vunpack.c.h.b16 %v707
    %v807 = vunpack.c.l.b16 %v708
    %v808 = vunpack.c.h.b16 %v708
    %v809 = vunpack.c.l.b16 %v709
    %v810 = vunpack.c.h.b16 %v709
    %v811 = vunpack.c.l.b16 %v710
    %v812 = vunpack.c.h.b16 %v710
    %v813 = vunpack.c.l.b16 %v711
    %v814 = vunpack.c.h.b16 %v711
    %v815 = vunpack.c.l.b16 %v712
    %v816 = vunpack.c.h.b16 %v712
    %v817 = vunpack.c.l.b16 %v713
    %v818 = vunpack.c.h.b16 %v713
    %v819 = vunpack.c.l.b16 %v714
    %v820 = vunpack.c.h.b16 %v714
    %v821 = vunpack.c.l.b16 %v715
    %v822 = vunpack.c.h.b16 %v715
    %v823 = vunpack.c.l.b16 %v716
    %v824 = vunpack.c.h.b16 %v716
    %v825 = vunpack.c.l.b16 %v717
    %v826 = vunpack.c.h.b16 %v717
    %v827 = vunpack.c.l.b16 %v718
    %v828 = vunpack.c.h.b16 %v718
    %v829 = vunpack.c.l.b16 %v719
    %v830 = vunpack.c.h.b16 %v719
    %v831 = vunpack.c.l.b16 %v720
    %v832 = vunpack.c.h.b16 %v720
    %v833 = vpack.c.b16 %v771, %v769
    %v834 = vpack.c.b16 %v772, %v770
    %v835 = vpack.c.b16 %v775, %v773
    %v836 = vpack.c.b16 %v776, %v774
    %v837 = vpack.c.b16 %v779, %v777
    %v838 = vpack.c.b16 %v780, %v778
    %v839 = vpack.c.b16 %v783, %v781
    %v840 = vpack.c.b16 %v784, %v782
    %v841 = vpack.c.b16 %v787, %v785
    %v842 = vpack.c.b16 %v788, %v786
    %v843 = vpack.c.b16 %v791, %v789
    %v844 = vpack.c.b16 %v792, %v790
    %v845 = vpack.c.b16 %v795, %v793
    %v846 = vpack.c.b16 %v796, %v794
    %v847 = vpack.c.b16 %v799, %v797
    %v848 = vpack.c.b16 %v800, %v798
    %v849 = vpack.c.b16 %v803, %v801
    %v850 = vpack.c.b16 %v804, %v802
    %v851 = vpack.c.b16 %v807, %v805
    %v852 = vpack.c.b16 %v808, %v806
    %v853 = vpack.c.b16 %v811, %v809
    %v854 = vpack.c.b16 %v812, %v810
    %v855 = vpack.c.b16 %v815, %v813
    %v856 = vpack.c.b16 %v816, %v814
    %v857 = vpack.c.b16 %v819, %v817
    %v858 = vpack.c.b16 %v820, %v818
    %v859 = vpack.c.b16 %v823, %v821
    %v860 = vpack.c.b16 %v824, %v822
    %v861 = vpack.c.b16 %v827, %v825
    %v862 = vpack.c.b16 %v828, %v826
    %v863 = vpack.c.b16 %v831, %v829
    %v864 = vpack.c.b16 %v832, %v830
    %897 = vmatprep.subr.bf16.mxu0 0
    %898 = vmatpush1.bf16.msra.mxu0 %v721
    %899 = vmatprep.subr.bf16.mxu0 0
    %900 = vmatpush1.bf16.msra.mxu0 %v722
    %901 = vmatprep.subr.bf16.mxu0 0
    %902 = vmatpush1.bf16.msra.mxu0 %v723
    %903 = vmatprep.subr.bf16.mxu0 0
    %904 = vmatpush1.bf16.msra.mxu0 %v724
    %905 = vmatprep.subr.bf16.mxu0 0
    %906 = vmatpush1.bf16.msra.mxu0 %v725
    %907 = vmatprep.subr.bf16.mxu0 0
    %908 = vmatpush1.bf16.msra.mxu0 %v726
    %909 = vmatprep.subr.bf16.mxu0 0
    %910 = vmatpush1.bf16.msra.mxu0 %v727
    %911 = vmatprep.subr.bf16.mxu0 0
    %912 = vmatpush1.bf16.msra.mxu0 %v728
    %913 = vmatprep.subr.bf16.mxu0 0
    %914 = vmatpush1.bf16.msra.mxu0 %v729
    %915 = vmatprep.subr.bf16.mxu0 0
    %916 = vmatpush1.bf16.msra.mxu0 %v730
    %917 = vmatprep.subr.bf16.mxu0 0
    %918 = vmatpush1.bf16.msra.mxu0 %v731
    %919 = vmatprep.subr.bf16.mxu0 0
    %920 = vmatpush1.bf16.msra.mxu0 %v732
    %921 = vmatprep.subr.bf16.mxu0 0
    %922 = vmatpush1.bf16.msra.mxu0 %v733
    %923 = vmatprep.subr.bf16.mxu0 0
    %924 = vmatpush1.bf16.msra.mxu0 %v734
    %925 = vmatprep.subr.bf16.mxu0 0
    %926 = vmatpush1.bf16.msra.mxu0 %v735
    %927 = vmatprep.subr.bf16.mxu0 0
    %928 = vmatpush1.bf16.msra.mxu0 %v736
    %929 = vmatprep.mubr.bf16.mxu0 %v834
    %930 = vmatmul.mubr.bf16.gmra.mrb[0].mxu0 %v833
    %v931 = vpop.f32.mrb[0].mxu0
    %v932 = vadd.f32 0.0, %v931
    %v933 = vpop.f32.mrb[0].mxu0
    %v934 = vpop.f32.mrb[0].mxu0
    %v935 = vadd.f32 0.0, %v934
    %v936 = vpop.f32.mrb[0].mxu0
    %937 = vmatprep.mubr.bf16.mxu0 %v836
    %938 = vmatmul.mubr.bf16.gmra.mrb[0].mxu0 %v835
    %v939 = vpop.f32.mrb[0].mxu0
    %v940 = vadd.f32 0.0, %v939
    %v941 = vpop.f32.mrb[0].mxu0
    %v942 = vpop.f32.mrb[0].mxu0
    %v943 = vadd.f32 0.0, %v942
    %v944 = vpop.f32.mrb[0].mxu0
    %945 = vmatprep.mubr.bf16.mxu0 %v838
    %946 = vmatmul.mubr.bf16.gmra.mrb[0].mxu0 %v837
    %v947 = vpop.f32.mrb[0].mxu0
    %v948 = vadd.f32 0.0, %v947
    %v949 = vpop.f32.mrb[0].mxu0
    %v950 = vpop.f32.mrb[0].mxu0
    %v951 = vadd.f32 0.0, %v950
    %v952 = vpop.f32.mrb[0].mxu0
    %953 = vmatprep.mubr.bf16.mxu0 %v840
    %954 = vmatmul.mubr.bf16.gmra.mrb[0].mxu0 %v839
    %v955 = vpop.f32.mrb[0].mxu0
    %v956 = vadd.f32 0.0, %v955
    %v957 = vpop.f32.mrb[0].mxu0
    %v958 = vpop.f32.mrb[0].mxu0
    %v959 = vadd.f32 0.0, %v958
    %v960 = vpop.f32.mrb[0].mxu0
    %961 = vmatprep.mubr.bf16.mxu0 %v842
    %962 = vmatmul.mubr.bf16.gmra.mrb[0].mxu0 %v841
    %v963 = vpop.f32.mrb[0].mxu0
    %v964 = vadd.f32 0.0, %v963
    %v965 = vpop.f32.mrb[0].mxu0
    %v966 = vpop.f32.mrb[0].mxu0
    %v967 = vadd.f32 0.0, %v966
    %v968 = vpop.f32.mrb[0].mxu0
    %969 = vmatprep.mubr.bf16.mxu0 %v844
    %970 = vmatmul.mubr.bf16.gmra.mrb[0].mxu0 %v843
    %v971 = vpop.f32.mrb[0].mxu0
    %v972 = vadd.f32 0.0, %v971
    %v973 = vpop.f32.mrb[0].mxu0
    %v974 = vpop.f32.mrb[0].mxu0
    %v975 = vadd.f32 0.0, %v974
    %v976 = vpop.f32.mrb[0].mxu0
    %977 = vmatprep.mubr.bf16.mxu0 %v846
    %978 = vmatmul.mubr.bf16.gmra.mrb[0].mxu0 %v845
    %v979 = vpop.f32.mrb[0].mxu0
    %v980 = vadd.f32 0.0, %v979
    %v981 = vpop.f32.mrb[0].mxu0
    %v982 = vpop.f32.mrb[0].mxu0
    %v983 = vadd.f32 0.0, %v982
    %v984 = vpop.f32.mrb[0].mxu0
    %985 = vmatprep.mubr.bf16.mxu0 %v848
    %986 = vmatmul.mubr.bf16.gmra.mrb[0].mxu0 %v847
    %v987 = vpop.f32.mrb[0].mxu0
    %v988 = vadd.f32 0.0, %v987
    %v989 = vpop.f32.mrb[0].mxu0
    %v990 = vpop.f32.mrb[0].mxu0
    %v991 = vadd.f32 0.0, %v990
    %v992 = vpop.f32.mrb[0].mxu0
    %993 = vmatprep.mubr.bf16.mxu0 %v850
    %994 = vmatmul.mubr.bf16.gmra.mrb[0].mxu0 %v849
    %v995 = vpop.f32.mrb[0].mxu0
    %v996 = vadd.f32 0.0, %v995
    %v997 = vpop.f32.mrb[0].mxu0
    %v998 = vpop.f32.mrb[0].mxu0
    %v999 = vadd.f32 0.0, %v998
    %v1000 = vpop.f32.mrb[0].mxu0
    %1001 = vmatprep.mubr.bf16.mxu0 %v852
    %1002 = vmatmul.mubr.bf16.gmra.mrb[0].mxu0 %v851
    %v1003 = vpop.f32.mrb[0].mxu0
    %v1004 = vadd.f32 0.0, %v1003
    %v1005 = vpop.f32.mrb[0].mxu0
    %v1006 = vpop.f32.mrb[0].mxu0
    %v1007 = vadd.f32 0.0, %v1006
    %v1008 = vpop.f32.mrb[0].mxu0
    %1009 = vmatprep.mubr.bf16.mxu0 %v854
    %1010 = vmatmul.mubr.bf16.gmra.mrb[0].mxu0 %v853
    %v1011 = vpop.f32.mrb[0].mxu0
    %v1012 = vadd.f32 0.0, %v1011
    %v1013 = vpop.f32.mrb[0].mxu0
    %v1014 = vpop.f32.mrb[0].mxu0
    %v1015 = vadd.f32 0.0, %v1014
    %v1016 = vpop.f32.mrb[0].mxu0
    %1017 = vmatprep.mubr.bf16.mxu0 %v856
    %1018 = vmatmul.mubr.bf16.gmra.mrb[0].mxu0 %v855
    %v1019 = vpop.f32.mrb[0].mxu0
    %v1020 = vadd.f32 0.0, %v1019
    %v1021 = vpop.f32.mrb[0].mxu0
    %v1022 = vpop.f32.mrb[0].mxu0
    %v1023 = vadd.f32 0.0, %v1022
    %v1024 = vpop.f32.mrb[0].mxu0
    %1025 = vmatprep.mubr.bf16.mxu0 %v858
    %1026 = vmatmul.mubr.bf16.gmra.mrb[0].mxu0 %v857
    %v1027 = vpop.f32.mrb[0].mxu0
    %v1028 = vadd.f32 0.0, %v1027
    %v1029 = vpop.f32.mrb[0].mxu0
    %v1030 = vpop.f32.mrb[0].mxu0
    %v1031 = vadd.f32 0.0, %v1030
    %v1032 = vpop.f32.mrb[0].mxu0
    %1033 = vmatprep.mubr.bf16.mxu0 %v860
    %1034 = vmatmul.mubr.bf16.gmra.mrb[0].mxu0 %v859
    %v1035 = vpop.f32.mrb[0].mxu0
    %v1036 = vadd.f32 0.0, %v1035
    %v1037 = vpop.f32.mrb[0].mxu0
    %v1038 = vpop.f32.mrb[0].mxu0
    %v1039 = vadd.f32 0.0, %v1038
    %v1040 = vpop.f32.mrb[0].mxu0
    %1041 = vmatprep.mubr.bf16.mxu0 %v862
    %1042 = vmatmul.mubr.bf16.gmra.mrb[0].mxu0 %v861
    %v1043 = vpop.f32.mrb[0].mxu0
    %v1044 = vadd.f32 0.0, %v1043
    %v1045 = vpop.f32.mrb[0].mxu0
    %v1046 = vpop.f32.mrb[0].mxu0
    %v1047 = vadd.f32 0.0, %v1046
    %v1048 = vpop.f32.mrb[0].mxu0
    %1049 = vmatprep.mubr.bf16.mxu0 %v864
    %1050 = vmatmul.mubr.bf16.gmra.mrb[0].mxu0 %v863
    %v1051 = vpop.f32.mrb[0].mxu0
    %v1052 = vadd.f32 0.0, %v1051
    %v1053 = vpop.f32.mrb[0].mxu0
    %v1054 = vpop.f32.mrb[0].mxu0
    %v1055 = vadd.f32 0.0, %v1054
    %v1056 = vpop.f32.mrb[0].mxu0
    %1057 = vdwg.mxu0
    %v1058 = vld [vmem:[%s3] sm:$0xff]
    %v1059 = vld [vmem:[%s3 + $0x8] sm:$0xff]
    %v1060 = vld [vmem:[%s3 + $0x10] sm:$0xff]
    %v1061 = vld [vmem:[%s3 + $0x18] sm:$0xff]
    %v1062 = vld [vmem:[%s3 + $0x20] sm:$0xff]
    %v1063 = vld [vmem:[%s3 + $0x28] sm:$0xff]
    %v1064 = vld [vmem:[%s3 + $0x30] sm:$0xff]
    %v1065 = vld [vmem:[%s3 + $0x38] sm:$0xff]
    %v1066 = vld [vmem:[%s3 + $0x40] sm:$0xff]
    %v1067 = vld [vmem:[%s3 + $0x48] sm:$0xff]
    %v1068 = vld [vmem:[%s3 + $0x50] sm:$0xff]
    %v1069 = vld [vmem:[%s3 + $0x58] sm:$0xff]
    %v1070 = vld [vmem:[%s3 + $0x60] sm:$0xff]
    %v1071 = vld [vmem:[%s3 + $0x68] sm:$0xff]
    %v1072 = vld [vmem:[%s3 + $0x70] sm:$0xff]
    %v1073 = vld [vmem:[%s3 + $0x78] sm:$0xff]
    %v1074 = vld [vmem:[%s3 + $0x80] sm:$0xff]
    %v1075 = vld [vmem:[%s3 + $0x88] sm:$0xff]
    %v1076 = vld [vmem:[%s3 + $0x90] sm:$0xff]
    %v1077 = vld [vmem:[%s3 + $0x98] sm:$0xff]
    %v1078 = vld [vmem:[%s3 + $0xa0] sm:$0xff]
    %v1079 = vld [vmem:[%s3 + $0xa8] sm:$0xff]
    %v1080 = vld [vmem:[%s3 + $0xb0] sm:$0xff]
    %v1081 = vld [vmem:[%s3 + $0xb8] sm:$0xff]
    %v1082 = vld [vmem:[%s3 + $0xc0] sm:$0xff]
    %v1083 = vld [vmem:[%s3 + $0xc8] sm:$0xff]
    %v1084 = vld [vmem:[%s3 + $0xd0] sm:$0xff]
    %v1085 = vld [vmem:[%s3 + $0xd8] sm:$0xff]
    %v1086 = vld [vmem:[%s3 + $0xe0] sm:$0xff]
    %v1087 = vld [vmem:[%s3 + $0xe8] sm:$0xff]
    %v1088 = vld [vmem:[%s3 + $0xf0] sm:$0xff]
    %v1089 = vld [vmem:[%s3 + $0xf8] sm:$0xff]
    %s1090 = sld [smem:[#allocation3 + $0x2]]
    %v1091 = vstv %s1090
    %v1092 = vmul.f32 %v1091, %v932
    %v1093 = vmul.f32 %v1091, %v935
    %v1094 = vmul.f32 %v1091, %v940
    %v1095 = vmul.f32 %v1091, %v943
    %v1096 = vmul.f32 %v1091, %v948
    %v1097 = vmul.f32 %v1091, %v951
    %v1098 = vmul.f32 %v1091, %v956
    %v1099 = vmul.f32 %v1091, %v959
    %v1100 = vmul.f32 %v1091, %v964
    %v1101 = vmul.f32 %v1091, %v967
    %v1102 = vmul.f32 %v1091, %v972
    %v1103 = vmul.f32 %v1091, %v975
    %v1104 = vmul.f32 %v1091, %v980
    %v1105 = vmul.f32 %v1091, %v983
    %v1106 = vmul.f32 %v1091, %v988
    %v1107 = vmul.f32 %v1091, %v991
    %v1108 = vmul.f32 %v1091, %v996
    %v1109 = vmul.f32 %v1091, %v999
    %v1110 = vmul.f32 %v1091, %v1004
    %v1111 = vmul.f32 %v1091, %v1007
    %v1112 = vmul.f32 %v1091, %v1012
    %v1113 = vmul.f32 %v1091, %v1015
    %v1114 = vmul.f32 %v1091, %v1020
    %v1115 = vmul.f32 %v1091, %v1023
    %v1116 = vmul.f32 %v1091, %v1028
    %v1117 = vmul.f32 %v1091, %v1031
    %v1118 = vmul.f32 %v1091, %v1036
    %v1119 = vmul.f32 %v1091, %v1039
    %v1120 = vmul.f32 %v1091, %v1044
    %v1121 = vmul.f32 %v1091, %v1047
    %v1122 = vmul.f32 %v1091, %v1052
    %v1123 = vmul.f32 %v1091, %v1055
    %v1124 = vadd.f32 %v1058, %v1092
    %v1125 = vadd.f32 %v1059, %v1093
    %v1126 = vadd.f32 %v1060, %v1094
    %v1127 = vadd.f32 %v1061, %v1095
    %v1128 = vadd.f32 %v1062, %v1096
    %v1129 = vadd.f32 %v1063, %v1097
    %v1130 = vadd.f32 %v1064, %v1098
    %v1131 = vadd.f32 %v1065, %v1099
    %v1132 = vadd.f32 %v1066, %v1100
    %v1133 = vadd.f32 %v1067, %v1101
    %v1134 = vadd.f32 %v1068, %v1102
    %v1135 = vadd.f32 %v1069, %v1103
    %v1136 = vadd.f32 %v1070, %v1104
    %v1137 = vadd.f32 %v1071, %v1105
    %v1138 = vadd.f32 %v1072, %v1106
    %v1139 = vadd.f32 %v1073, %v1107
    %v1140 = vadd.f32 %v1074, %v1108
    %v1141 = vadd.f32 %v1075, %v1109
    %v1142 = vadd.f32 %v1076, %v1110
    %v1143 = vadd.f32 %v1077, %v1111
    %v1144 = vadd.f32 %v1078, %v1112
    %v1145 = vadd.f32 %v1079, %v1113
    %v1146 = vadd.f32 %v1080, %v1114
    %v1147 = vadd.f32 %v1081, %v1115
    %v1148 = vadd.f32 %v1082, %v1116
    %v1149 = vadd.f32 %v1083, %v1117
    %v1150 = vadd.f32 %v1084, %v1118
    %v1151 = vadd.f32 %v1085, %v1119
    %v1152 = vadd.f32 %v1086, %v1120
    %v1153 = vadd.f32 %v1087, %v1121
    %v1154 = vadd.f32 %v1088, %v1122
    %v1155 = vadd.f32 %v1089, %v1123
    %1156 = vst [vmem:[%s3] sm:$0xff] %v1124
    %1157 = vst [vmem:[%s3 + $0x8] sm:$0xff] %v1125
    %1158 = vst [vmem:[%s3 + $0x10] sm:$0xff] %v1126
    %1159 = vst [vmem:[%s3 + $0x18] sm:$0xff] %v1127
    %1160 = vst [vmem:[%s3 + $0x20] sm:$0xff] %v1128
    %1161 = vst [vmem:[%s3 + $0x28] sm:$0xff] %v1129
    %1162 = vst [vmem:[%s3 + $0x30] sm:$0xff] %v1130
    %1163 = vst [vmem:[%s3 + $0x38] sm:$0xff] %v1131
    %1164 = vst [vmem:[%s3 + $0x40] sm:$0xff] %v1132
    %1165 = vst [vmem:[%s3 + $0x48] sm:$0xff] %v1133
    %1166 = vst [vmem:[%s3 + $0x50] sm:$0xff] %v1134
    %1167 = vst [vmem:[%s3 + $0x58] sm:$0xff] %v1135
    %1168 = vst [vmem:[%s3 + $0x60] sm:$0xff] %v1136
    %1169 = vst [vmem:[%s3 + $0x68] sm:$0xff] %v1137
    %1170 = vst [vmem:[%s3 + $0x70] sm:$0xff] %v1138
    %1171 = vst [vmem:[%s3 + $0x78] sm:$0xff] %v1139
    %1172 = vst [vmem:[%s3 + $0x80] sm:$0xff] %v1140
    %1173 = vst [vmem:[%s3 + $0x88] sm:$0xff] %v1141
    %1174 = vst [vmem:[%s3 + $0x90] sm:$0xff] %v1142
    %1175 = vst [vmem:[%s3 + $0x98] sm:$0xff] %v1143
    %1176 = vst [vmem:[%s3 + $0xa0] sm:$0xff] %v1144
    %1177 = vst [vmem:[%s3 + $0xa8] sm:$0xff] %v1145
    %1178 = vst [vmem:[%s3 + $0xb0] sm:$0xff] %v1146
    %1179 = vst [vmem:[%s3 + $0xb8] sm:$0xff] %v1147
    %1180 = vst [vmem:[%s3 + $0xc0] sm:$0xff] %v1148
    %1181 = vst [vmem:[%s3 + $0xc8] sm:$0xff] %v1149
    %1182 = vst [vmem:[%s3 + $0xd0] sm:$0xff] %v1150
    %1183 = vst [vmem:[%s3 + $0xd8] sm:$0xff] %v1151
    %1184 = vst [vmem:[%s3 + $0xe0] sm:$0xff] %v1152
    %1185 = vst [vmem:[%s3 + $0xe8] sm:$0xff] %v1153
    %1186 = vst [vmem:[%s3 + $0xf0] sm:$0xff] %v1154
    %1187 = vst [vmem:[%s3 + $0xf8] sm:$0xff] %v1155
    %v1188 = vpack.c.bf16 %v935, %v932
    %v1189 = vpack.c.bf16 %v943, %v940
    %v1190 = vpack.c.bf16 %v951, %v948
    %v1191 = vpack.c.bf16 %v959, %v956
    %v1192 = vpack.c.bf16 %v967, %v964
    %v1193 = vpack.c.bf16 %v975, %v972
    %v1194 = vpack.c.bf16 %v983, %v980
    %v1195 = vpack.c.bf16 %v991, %v988
    %v1196 = vpack.c.bf16 %v999, %v996
    %v1197 = vpack.c.bf16 %v1007, %v1004
    %v1198 = vpack.c.bf16 %v1015, %v1012
    %v1199 = vpack.c.bf16 %v1023, %v1020
    %v1200 = vpack.c.bf16 %v1031, %v1028
    %v1201 = vpack.c.bf16 %v1039, %v1036
    %v1202 = vpack.c.bf16 %v1047, %v1044
    %v1203 = vpack.c.bf16 %v1055, %v1052
    %1204 = vst [vmem:[#allocation2] sm:$0xff] %v1188
    %1205 = vst [vmem:[#allocation2 + $0x8] sm:$0xff] %v1189
    %1206 = vst [vmem:[#allocation2 + $0x10] sm:$0xff] %v1190
    %1207 = vst [vmem:[#allocation2 + $0x18] sm:$0xff] %v1191
    %1208 = vst [vmem:[#allocation2 + $0x20] sm:$0xff] %v1192
    %1209 = vst [vmem:[#allocation2 + $0x28] sm:$0xff] %v1193
    %1210 = vst [vmem:[#allocation2 + $0x30] sm:$0xff] %v1194
    %1211 = vst [vmem:[#allocation2 + $0x38] sm:$0xff] %v1195
    %1212 = vst [vmem:[#allocation2 + $0x40] sm:$0xff] %v1196
    %1213 = vst [vmem:[#allocation2 + $0x48] sm:$0xff] %v1197
    %1214 = vst [vmem:[#allocation2 + $0x50] sm:$0xff] %v1198
    %1215 = vst [vmem:[#allocation2 + $0x58] sm:$0xff] %v1199
    %1216 = vst [vmem:[#allocation2 + $0x60] sm:$0xff] %v1200
    %1217 = vst [vmem:[#allocation2 + $0x68] sm:$0xff] %v1201
    %1218 = vst [vmem:[#allocation2 + $0x70] sm:$0xff] %v1202
    %1219 = vst [vmem:[#allocation2 + $0x78] sm:$0xff] %v1203
    %v1220 = vld [vmem:[%s1] sm:$0xff]
    %v1221 = vld [vmem:[%s1 + $0x8] sm:$0xff]
    %v1222 = vld [vmem:[%s1 + $0x10] sm:$0xff]
    %v1223 = vld [vmem:[%s1 + $0x18] sm:$0xff]
    %v1224 = vld [vmem:[%s1 + $0x20] sm:$0xff]
    %v1225 = vld [vmem:[%s1 + $0x28] sm:$0xff]
    %v1226 = vld [vmem:[%s1 + $0x30] sm:$0xff]
    %v1227 = vld [vmem:[%s1 + $0x38] sm:$0xff]
    %v1228 = vld [vmem:[%s1 + $0x40] sm:$0xff]
    %v1229 = vld [vmem:[%s1 + $0x48] sm:$0xff]
    %v1230 = vld [vmem:[%s1 + $0x50] sm:$0xff]
    %v1231 = vld [vmem:[%s1 + $0x58] sm:$0xff]
    %v1232 = vld [vmem:[%s1 + $0x60] sm:$0xff]
    %v1233 = vld [vmem:[%s1 + $0x68] sm:$0xff]
    %v1234 = vld [vmem:[%s1 + $0x70] sm:$0xff]
    %v1235 = vld [vmem:[%s1 + $0x78] sm:$0xff]
    %v1236 = vld [vmem:[%s1 + $0x80] sm:$0xff]
    %v1237 = vld [vmem:[%s1 + $0x88] sm:$0xff]
    %v1238 = vld [vmem:[%s1 + $0x90] sm:$0xff]
    %v1239 = vld [vmem:[%s1 + $0x98] sm:$0xff]
    %v1240 = vld [vmem:[%s1 + $0xa0] sm:$0xff]
    %v1241 = vld [vmem:[%s1 + $0xa8] sm:$0xff]
    %v1242 = vld [vmem:[%s1 + $0xb0] sm:$0xff]
    %v1243 = vld [vmem:[%s1 + $0xb8] sm:$0xff]
    %v1244 = vld [vmem:[%s1 + $0xc0] sm:$0xff]
    %v1245 = vld [vmem:[%s1 + $0xc8] sm:$0xff]
    %v1246 = vld [vmem:[%s1 + $0xd0] sm:$0xff]
    %v1247 = vld [vmem:[%s1 + $0xd8] sm:$0xff]
    %v1248 = vld [vmem:[%s1 + $0xe0] sm:$0xff]
    %v1249 = vld [vmem:[%s1 + $0xe8] sm:$0xff]
    %v1250 = vld [vmem:[%s1 + $0xf0] sm:$0xff]
    %v1251 = vld [vmem:[%s1 + $0xf8] sm:$0xff]
    %v1252 = vld [vmem:[#allocation2] sm:$0xff]
    %v1253 = vld [vmem:[#allocation2 + $0x8] sm:$0xff]
    %v1254 = vld [vmem:[#allocation2 + $0x10] sm:$0xff]
    %v1255 = vld [vmem:[#allocation2 + $0x18] sm:$0xff]
    %v1256 = vld [vmem:[#allocation2 + $0x20] sm:$0xff]
    %v1257 = vld [vmem:[#allocation2 + $0x28] sm:$0xff]
    %v1258 = vld [vmem:[#allocation2 + $0x30] sm:$0xff]
    %v1259 = vld [vmem:[#allocation2 + $0x38] sm:$0xff]
    %v1260 = vld [vmem:[#allocation2 + $0x40] sm:$0xff]
    %v1261 = vld [vmem:[#allocation2 + $0x48] sm:$0xff]
    %v1262 = vld [vmem:[#allocation2 + $0x50] sm:$0xff]
    %v1263 = vld [vmem:[#allocation2 + $0x58] sm:$0xff]
    %v1264 = vld [vmem:[#allocation2 + $0x60] sm:$0xff]
    %v1265 = vld [vmem:[#allocation2 + $0x68] sm:$0xff]
    %v1266 = vld [vmem:[#allocation2 + $0x70] sm:$0xff]
    %v1267 = vld [vmem:[#allocation2 + $0x78] sm:$0xff]
    %v1300 = vunpack.c.l.b16 %v1220
    %v1301 = vunpack.c.h.b16 %v1220
    %v1302 = vunpack.c.l.b16 %v1221
    %v1303 = vunpack.c.h.b16 %v1221
    %v1304 = vunpack.c.l.b16 %v1222
    %v1305 = vunpack.c.h.b16 %v1222
    %v1306 = vunpack.c.l.b16 %v1223
    %v1307 = vunpack.c.h.b16 %v1223
    %v1308 = vunpack.c.l.b16 %v1224
    %v1309 = vunpack.c.h.b16 %v1224
    %v1310 = vunpack.c.l.b16 %v1225
    %v1311 = vunpack.c.h.b16 %v1225
    %v1312 = vunpack.c.l.b16 %v1226
    %v1313 = vunpack.c.h.b16 %v1226
    %v1314 = vunpack.c.l.b16 %v1227
    %v1315 = vunpack.c.h.b16 %v1227
    %v1316 = vunpack.c.l.b16 %v1228
    %v1317 = vunpack.c.h.b16 %v1228
    %v1318 = vunpack.c.l.b16 %v1229
    %v1319 = vunpack.c.h.b16 %v1229
    %v1320 = vunpack.c.l.b16 %v1230
    %v1321 = vunpack.c.h.b16 %v1230
    %v1322 = vunpack.c.l.b16 %v1231
    %v1323 = vunpack.c.h.b16 %v1231
    %v1324 = vunpack.c.l.b16 %v1232
    %v1325 = vunpack.c.h.b16 %v1232
    %v1326 = vunpack.c.l.b16 %v1233
    %v1327 = vunpack.c.h.b16 %v1233
    %v1328 = vunpack.c.l.b16 %v1234
    %v1329 = vunpack.c.h.b16 %v1234
    %v1330 = vunpack.c.l.b16 %v1235
    %v1331 = vunpack.c.h.b16 %v1235
    %v1332 = vunpack.c.l.b16 %v1236
    %v1333 = vunpack.c.h.b16 %v1236
    %v1334 = vunpack.c.l.b16 %v1237
    %v1335 = vunpack.c.h.b16 %v1237
    %v1336 = vunpack.c.l.b16 %v1238
    %v1337 = vunpack.c.h.b16 %v1238
    %v1338 = vunpack.c.l.b16 %v1239
    %v1339 = vunpack.c.h.b16 %v1239
    %v1340 = vunpack.c.l.b16 %v1240
    %v1341 = vunpack.c.h.b16 %v1240
    %v1342 = vunpack.c.l.b16 %v1241
    %v1343 = vunpack.c.h.b16 %v1241
    %v1344 = vunpack.c.l.b16 %v1242
    %v1345 = vunpack.c.h.b16 %v1242
    %v1346 = vunpack.c.l.b16 %v1243
    %v1347 = vunpack.c.h.b16 %v1243
    %v1348 = vunpack.c.l.b16 %v1244
    %v1349 = vunpack.c.h.b16 %v1244
    %v1350 = vunpack.c.l.b16 %v1245
    %v1351 = vunpack.c.h.b16 %v1245
    %v1352 = vunpack.c.l.b16 %v1246
    %v1353 = vunpack.c.h.b16 %v1246
    %v1354 = vunpack.c.l.b16 %v1247
    %v1355 = vunpack.c.h.b16 %v1247
    %v1356 = vunpack.c.l.b16 %v1248
    %v1357 = vunpack.c.h.b16 %v1248
    %v1358 = vunpack.c.l.b16 %v1249
    %v1359 = vunpack.c.h.b16 %v1249
    %v1360 = vunpack.c.l.b16 %v1250
    %v1361 = vunpack.c.h.b16 %v1250
    %v1362 = vunpack.c.l.b16 %v1251
    %v1363 = vunpack.c.h.b16 %v1251
    %v1364 = vpack.c.b16 %v1302, %v1300
    %v1365 = vpack.c.b16 %v1303, %v1301
    %v1366 = vpack.c.b16 %v1306, %v1304
    %v1367 = vpack.c.b16 %v1307, %v1305
    %v1368 = vpack.c.b16 %v1310, %v1308
    %v1369 = vpack.c.b16 %v1311, %v1309
    %v1370 = vpack.c.b16 %v1314, %v1312
    %v1371 = vpack.c.b16 %v1315, %v1313
    %v1372 = vpack.c.b16 %v1318, %v1316
    %v1373 = vpack.c.b16 %v1319, %v1317
    %v1374 = vpack.c.b16 %v1322, %v1320
    %v1375 = vpack.c.b16 %v1323, %v1321
    %v1376 = vpack.c.b16 %v1326, %v1324
    %v1377 = vpack.c.b16 %v1327, %v1325
    %v1378 = vpack.c.b16 %v1330, %v1328
    %v1379 = vpack.c.b16 %v1331, %v1329
    %v1380 = vpack.c.b16 %v1334, %v1332
    %v1381 = vpack.c.b16 %v1335, %v1333
    %v1382 = vpack.c.b16 %v1338, %v1336
    %v1383 = vpack.c.b16 %v1339, %v1337
    %v1384 = vpack.c.b16 %v1342, %v1340
    %v1385 = vpack.c.b16 %v1343, %v1341
    %v1386 = vpack.c.b16 %v1346, %v1344
    %v1387 = vpack.c.b16 %v1347, %v1345
    %v1388 = vpack.c.b16 %v1350, %v1348
    %v1389 = vpack.c.b16 %v1351, %v1349
    %v1390 = vpack.c.b16 %v1354, %v1352
    %v1391 = vpack.c.b16 %v1355, %v1353
    %v1392 = vpack.c.b16 %v1358, %v1356
    %v1393 = vpack.c.b16 %v1359, %v1357
    %v1394 = vpack.c.b16 %v1362, %v1360
    %v1395 = vpack.c.b16 %v1363, %v1361
    %1428 = vmatprep.subr.bf16.mxu0 0
    %1429 = vmatpush1.bf16.msra.mxu0 %v1252
    %1430 = vmatprep.subr.bf16.mxu0 0
    %1431 = vmatpush1.bf16.msra.mxu0 %v1253
    %1432 = vmatprep.subr.bf16.mxu0 0
    %1433 = vmatpush1.bf16.msra.mxu0 %v1254
    %1434 = vmatprep.subr.bf16.mxu0 0
    %1435 = vmatpush1.bf16.msra.mxu0 %v1255
    %1436 = vmatprep.subr.bf16.mxu0 0
    %1437 = vmatpush1.bf16.msra.mxu0 %v1256
    %1438 = vmatprep.subr.bf16.mxu0 0
    %1439 = vmatpush1.bf16.msra.mxu0 %v1257
    %1440 = vmatprep.subr.bf16.mxu0 0
    %1441 = vmatpush1.bf16.msra.mxu0 %v1258
    %1442 = vmatprep.subr.bf16.mxu0 0
    %1443 = vmatpush1.bf16.msra.mxu0 %v1259
    %1444 = vmatprep.subr.bf16.mxu0 0
    %1445 = vmatpush1.bf16.msra.mxu0 %v1260
    %1446 = vmatprep.subr.bf16.mxu0 0
    %1447 = vmatpush1.bf16.msra.mxu0 %v1261
    %1448 = vmatprep.subr.bf16.mxu0 0
    %1449 = vmatpush1.bf16.msra.mxu0 %v1262
    %1450 = vmatprep.subr.bf16.mxu0 0
    %1451 = vmatpush1.bf16.msra.mxu0 %v1263
    %1452 = vmatprep.subr.bf16.mxu0 0
    %1453 = vmatpush1.bf16.msra.mxu0 %v1264
    %1454 = vmatprep.subr.bf16.mxu0 0
    %1455 = vmatpush1.bf16.msra.mxu0 %v1265
    %1456 = vmatprep.subr.bf16.mxu0 0
    %1457 = vmatpush1.bf16.msra.mxu0 %v1266
    %1458 = vmatprep.subr.bf16.mxu0 0
    %1459 = vmatpush1.bf16.msra.mxu0 %v1267
    %1460 = vmatprep.mubr.bf16.mxu0 %v1365
    %1461 = vmatmul.mubr.bf16.gmra.mrb[0].mxu0 %v1364
    %v1462 = vpop.f32.mrb[0].mxu0
    %v1463 = vadd.f32 0.0, %v1462
    %v1464 = vpop.f32.mrb[0].mxu0
    %v1465 = vpop.f32.mrb[0].mxu0
    %v1466 = vadd.f32 0.0, %v1465
    %v1467 = vpop.f32.mrb[0].mxu0
    %1468 = vmatprep.mubr.bf16.mxu0 %v1367
    %1469 = vmatmul.mubr.bf16.gmra.mrb[0].mxu0 %v1366
    %v1470 = vpop.f32.mrb[0].mxu0
    %v1471 = vadd.f32 0.0, %v1470
    %v1472 = vpop.f32.mrb[0].mxu0
    %v1473 = vpop.f32.mrb[0].mxu0
    %v1474 = vadd.f32 0.0, %v1473
    %v1475 = vpop.f32.mrb[0].mxu0
    %1476 = vmatprep.mubr.bf16.mxu0 %v1369
    %1477 = vmatmul.mubr.bf16.gmra.mrb[0].mxu0 %v1368
    %v1478 = vpop.f32.mrb[0].mxu0
    %v1479 = vadd.f32 0.0, %v1478
    %v1480 = vpop.f32.mrb[0].mxu0
    %v1481 = vpop.f32.mrb[0].mxu0
    %v1482 = vadd.f32 0.0, %v1481
    %v1483 = vpop.f32.mrb[0].mxu0
    %1484 = vmatprep.mubr.bf16.mxu0 %v1371
    %1485 = vmatmul.mubr.bf16.gmra.mrb[0].mxu0 %v1370
    %v1486 = vpop.f32.mrb[0].mxu0
    %v1487 = vadd.f32 0.0, %v1486
    %v1488 = vpop.f32.mrb[0].mxu0
    %v1489 = vpop.f32.mrb[0].mxu0
    %v1490 = vadd.f32 0.0, %v1489
    %v1491 = vpop.f32.mrb[0].mxu0
    %1492 = vmatprep.mubr.bf16.mxu0 %v1373
    %1493 = vmatmul.mubr.bf16.gmra.mrb[0].mxu0 %v1372
    %v1494 = vpop.f32.mrb[0].mxu0
    %v1495 = vadd.f32 0.0, %v1494
    %v1496 = vpop.f32.mrb[0].mxu0
    %v1497 = vpop.f32.mrb[0].mxu0
    %v1498 = vadd.f32 0.0, %v1497
    %v1499 = vpop.f32.mrb[0].mxu0
    %1500 = vmatprep.mubr.bf16.mxu0 %v1375
    %1501 = vmatmul.mubr.bf16.gmra.mrb[0].mxu0 %v1374
    %v1502 = vpop.f32.mrb[0].mxu0
    %v1503 = vadd.f32 0.0, %v1502
    %v1504 = vpop.f32.mrb[0].mxu0
    %v1505 = vpop.f32.mrb[0].mxu0
    %v1506 = vadd.f32 0.0, %v1505
    %v1507 = vpop.f32.mrb[0].mxu0
    %1508 = vmatprep.mubr.bf16.mxu0 %v1377
    %1509 = vmatmul.mubr.bf16.gmra.mrb[0].mxu0 %v1376
    %v1510 = vpop.f32.mrb[0].mxu0
    %v1511 = vadd.f32 0.0, %v1510
    %v1512 = vpop.f32.mrb[0].mxu0
    %v1513 = vpop.f32.mrb[0].mxu0
    %v1514 = vadd.f32 0.0, %v1513
    %v1515 = vpop.f32.mrb[0].mxu0
    %1516 = vmatprep.mubr.bf16.mxu0 %v1379
    %1517 = vmatmul.mubr.bf16.gmra.mrb[0].mxu0 %v1378
    %v1518 = vpop.f32.mrb[0].mxu0
    %v1519 = vadd.f32 0.0, %v1518
    %v1520 = vpop.f32.mrb[0].mxu0
    %v1521 = vpop.f32.mrb[0].mxu0
    %v1522 = vadd.f32 0.0, %v1521
    %v1523 = vpop.f32.mrb[0].mxu0
    %1524 = vmatprep.mubr.bf16.mxu0 %v1381
    %1525 = vmatmul.mubr.bf16.gmra.mrb[0].mxu0 %v1380
    %v1526 = vpop.f32.mrb[0].mxu0
    %v1527 = vadd.f32 0.0, %v1526
    %v1528 = vpop.f32.mrb[0].mxu0
    %v1529 = vpop.f32.mrb[0].mxu0
    %v1530 = vadd.f32 0.0, %v1529
    %v1531 = vpop.f32.mrb[0].mxu0
    %1532 = vmatprep.mubr.bf16.mxu0 %v1383
    %1533 = vmatmul.mubr.bf16.gmra.mrb[0].mxu0 %v1382
    %v1534 = vpop.f32.mrb[0].mxu0
    %v1535 = vadd.f32 0.0, %v1534
    %v1536 = vpop.f32.mrb[0].mxu0
    %v1537 = vpop.f32.mrb[0].mxu0
    %v1538 = vadd.f32 0.0, %v1537
    %v1539 = vpop.f32.mrb[0].mxu0
    %1540 = vmatprep.mubr.bf16.mxu0 %v1385
    %1541 = vmatmul.mubr.bf16.gmra.mrb[0].mxu0 %v1384
    %v1542 = vpop.f32.mrb[0].mxu0
    %v1543 = vadd.f32 0.0, %v1542
    %v1544 = vpop.f32.mrb[0].mxu0
    %v1545 = vpop.f32.mrb[0].mxu0
    %v1546 = vadd.f32 0.0, %v1545
    %v1547 = vpop.f32.mrb[0].mxu0
    %1548 = vmatprep.mubr.bf16.mxu0 %v1387
    %1549 = vmatmul.mubr.bf16.gmra.mrb[0].mxu0 %v1386
    %v1550 = vpop.f32.mrb[0].mxu0
    %v1551 = vadd.f32 0.0, %v1550
    %v1552 = vpop.f32.mrb[0].mxu0
    %v1553 = vpop.f32.mrb[0].mxu0
    %v1554 = vadd.f32 0.0, %v1553
    %v1555 = vpop.f32.mrb[0].mxu0
    %1556 = vmatprep.mubr.bf16.mxu0 %v1389
    %1557 = vmatmul.mubr.bf16.gmra.mrb[0].mxu0 %v1388
    %v1558 = vpop.f32.mrb[0].mxu0
    %v1559 = vadd.f32 0.0, %v1558
    %v1560 = vpop.f32.mrb[0].mxu0
    %v1561 = vpop.f32.mrb[0].mxu0
    %v1562 = vadd.f32 0.0, %v1561
    %v1563 = vpop.f32.mrb[0].mxu0
    %1564 = vmatprep.mubr.bf16.mxu0 %v1391
    %1565 = vmatmul.mubr.bf16.gmra.mrb[0].mxu0 %v1390
    %v1566 = vpop.f32.mrb[0].mxu0
    %v1567 = vadd.f32 0.0, %v1566
    %v1568 = vpop.f32.mrb[0].mxu0
    %v1569 = vpop.f32.mrb[0].mxu0
    %v1570 = vadd.f32 0.0, %v1569
    %v1571 = vpop.f32.mrb[0].mxu0
    %1572 = vmatprep.mubr.bf16.mxu0 %v1393
    %1573 = vmatmul.mubr.bf16.gmra.mrb[0].mxu0 %v1392
    %v1574 = vpop.f32.mrb[0].mxu0
    %v1575 = vadd.f32 0.0, %v1574
    %v1576 = vpop.f32.mrb[0].mxu0
    %v1577 = vpop.f32.mrb[0].mxu0
    %v1578 = vadd.f32 0.0, %v1577
    %v1579 = vpop.f32.mrb[0].mxu0
    %1580 = vmatprep.mubr.bf16.mxu0 %v1395
    %1581 = vmatmul.mubr.bf16.gmra.mrb[0].mxu0 %v1394
    %v1582 = vpop.f32.mrb[0].mxu0
    %v1583 = vadd.f32 0.0, %v1582
    %v1584 = vpop.f32.mrb[0].mxu0
    %v1585 = vpop.f32.mrb[0].mxu0
    %v1586 = vadd.f32 0.0, %v1585
    %v1587 = vpop.f32.mrb[0].mxu0
    %1588 = vdwg.mxu0
    %v1589 = vld [vmem:[%s3] sm:$0xff]
    %v1590 = vld [vmem:[%s3 + $0x8] sm:$0xff]
    %v1591 = vld [vmem:[%s3 + $0x10] sm:$0xff]
    %v1592 = vld [vmem:[%s3 + $0x18] sm:$0xff]
    %v1593 = vld [vmem:[%s3 + $0x20] sm:$0xff]
    %v1594 = vld [vmem:[%s3 + $0x28] sm:$0xff]
    %v1595 = vld [vmem:[%s3 + $0x30] sm:$0xff]
    %v1596 = vld [vmem:[%s3 + $0x38] sm:$0xff]
    %v1597 = vld [vmem:[%s3 + $0x40] sm:$0xff]
    %v1598 = vld [vmem:[%s3 + $0x48] sm:$0xff]
    %v1599 = vld [vmem:[%s3 + $0x50] sm:$0xff]
    %v1600 = vld [vmem:[%s3 + $0x58] sm:$0xff]
    %v1601 = vld [vmem:[%s3 + $0x60] sm:$0xff]
    %v1602 = vld [vmem:[%s3 + $0x68] sm:$0xff]
    %v1603 = vld [vmem:[%s3 + $0x70] sm:$0xff]
    %v1604 = vld [vmem:[%s3 + $0x78] sm:$0xff]
    %v1605 = vld [vmem:[%s3 + $0x80] sm:$0xff]
    %v1606 = vld [vmem:[%s3 + $0x88] sm:$0xff]
    %v1607 = vld [vmem:[%s3 + $0x90] sm:$0xff]
    %v1608 = vld [vmem:[%s3 + $0x98] sm:$0xff]
    %v1609 = vld [vmem:[%s3 + $0xa0] sm:$0xff]
    %v1610 = vld [vmem:[%s3 + $0xa8] sm:$0xff]
    %v1611 = vld [vmem:[%s3 + $0xb0] sm:$0xff]
    %v1612 = vld [vmem:[%s3 + $0xb8] sm:$0xff]
    %v1613 = vld [vmem:[%s3 + $0xc0] sm:$0xff]
    %v1614 = vld [vmem:[%s3 + $0xc8] sm:$0xff]
    %v1615 = vld [vmem:[%s3 + $0xd0] sm:$0xff]
    %v1616 = vld [vmem:[%s3 + $0xd8] sm:$0xff]
    %v1617 = vld [vmem:[%s3 + $0xe0] sm:$0xff]
    %v1618 = vld [vmem:[%s3 + $0xe8] sm:$0xff]
    %v1619 = vld [vmem:[%s3 + $0xf0] sm:$0xff]
    %v1620 = vld [vmem:[%s3 + $0xf8] sm:$0xff]
    %s1621 = sld [smem:[#allocation3 + $0x3]]
    %v1622 = vstv %s1621
    %v1623 = vmul.f32 %v1622, %v1463
    %v1624 = vmul.f32 %v1622, %v1466
    %v1625 = vmul.f32 %v1622, %v1471
    %v1626 = vmul.f32 %v1622, %v1474
    %v1627 = vmul.f32 %v1622, %v1479
    %v1628 = vmul.f32 %v1622, %v1482
    %v1629 = vmul.f32 %v1622, %v1487
    %v1630 = vmul.f32 %v1622, %v1490
    %v1631 = vmul.f32 %v1622, %v1495
    %v1632 = vmul.f32 %v1622, %v1498
    %v1633 = vmul.f32 %v1622, %v1503
    %v1634 = vmul.f32 %v1622, %v1506
    %v1635 = vmul.f32 %v1622, %v1511
    %v1636 = vmul.f32 %v1622, %v1514
    %v1637 = vmul.f32 %v1622, %v1519
    %v1638 = vmul.f32 %v1622, %v1522
    %v1639 = vmul.f32 %v1622, %v1527
    %v1640 = vmul.f32 %v1622, %v1530
    %v1641 = vmul.f32 %v1622, %v1535
    %v1642 = vmul.f32 %v1622, %v1538
    %v1643 = vmul.f32 %v1622, %v1543
    %v1644 = vmul.f32 %v1622, %v1546
    %v1645 = vmul.f32 %v1622, %v1551
    %v1646 = vmul.f32 %v1622, %v1554
    %v1647 = vmul.f32 %v1622, %v1559
    %v1648 = vmul.f32 %v1622, %v1562
    %v1649 = vmul.f32 %v1622, %v1567
    %v1650 = vmul.f32 %v1622, %v1570
    %v1651 = vmul.f32 %v1622, %v1575
    %v1652 = vmul.f32 %v1622, %v1578
    %v1653 = vmul.f32 %v1622, %v1583
    %v1654 = vmul.f32 %v1622, %v1586
    %v1655 = vadd.f32 %v1589, %v1623
    %v1656 = vadd.f32 %v1590, %v1624
    %v1657 = vadd.f32 %v1591, %v1625
    %v1658 = vadd.f32 %v1592, %v1626
    %v1659 = vadd.f32 %v1593, %v1627
    %v1660 = vadd.f32 %v1594, %v1628
    %v1661 = vadd.f32 %v1595, %v1629
    %v1662 = vadd.f32 %v1596, %v1630
    %v1663 = vadd.f32 %v1597, %v1631
    %v1664 = vadd.f32 %v1598, %v1632
    %v1665 = vadd.f32 %v1599, %v1633
    %v1666 = vadd.f32 %v1600, %v1634
    %v1667 = vadd.f32 %v1601, %v1635
    %v1668 = vadd.f32 %v1602, %v1636
    %v1669 = vadd.f32 %v1603, %v1637
    %v1670 = vadd.f32 %v1604, %v1638
    %v1671 = vadd.f32 %v1605, %v1639
    %v1672 = vadd.f32 %v1606, %v1640
    %v1673 = vadd.f32 %v1607, %v1641
    %v1674 = vadd.f32 %v1608, %v1642
    %v1675 = vadd.f32 %v1609, %v1643
    %v1676 = vadd.f32 %v1610, %v1644
    %v1677 = vadd.f32 %v1611, %v1645
    %v1678 = vadd.f32 %v1612, %v1646
    %v1679 = vadd.f32 %v1613, %v1647
    %v1680 = vadd.f32 %v1614, %v1648
    %v1681 = vadd.f32 %v1615, %v1649
    %v1682 = vadd.f32 %v1616, %v1650
    %v1683 = vadd.f32 %v1617, %v1651
    %v1684 = vadd.f32 %v1618, %v1652
    %v1685 = vadd.f32 %v1619, %v1653
    %v1686 = vadd.f32 %v1620, %v1654
    %1687 = vst [vmem:[%s3] sm:$0xff] %v1655
    %1688 = vst [vmem:[%s3 + $0x8] sm:$0xff] %v1656
    %1689 = vst [vmem:[%s3 + $0x10] sm:$0xff] %v1657
    %1690 = vst [vmem:[%s3 + $0x18] sm:$0xff] %v1658
    %1691 = vst [vmem:[%s3 + $0x20] sm:$0xff] %v1659
    %1692 = vst [vmem:[%s3 + $0x28] sm:$0xff] %v1660
    %1693 = vst [vmem:[%s3 + $0x30] sm:$0xff] %v1661
    %1694 = vst [vmem:[%s3 + $0x38] sm:$0xff] %v1662
    %1695 = vst [vmem:[%s3 + $0x40] sm:$0xff] %v1663
    %1696 = vst [vmem:[%s3 + $0x48] sm:$0xff] %v1664
    %1697 = vst [vmem:[%s3 + $0x50] sm:$0xff] %v1665
    %1698 = vst [vmem:[%s3 + $0x58] sm:$0xff] %v1666
    %1699 = vst [vmem:[%s3 + $0x60] sm:$0xff] %v1667
    %1700 = vst [vmem:[%s3 + $0x68] sm:$0xff] %v1668
    %1701 = vst [vmem:[%s3 + $0x70] sm:$0xff] %v1669
    %1702 = vst [vmem:[%s3 + $0x78] sm:$0xff] %v1670
    %1703 = vst [vmem:[%s3 + $0x80] sm:$0xff] %v1671
    %1704 = vst [vmem:[%s3 + $0x88] sm:$0xff] %v1672
    %1705 = vst [vmem:[%s3 + $0x90] sm:$0xff] %v1673
    %1706 = vst [vmem:[%s3 + $0x98] sm:$0xff] %v1674
    %1707 = vst [vmem:[%s3 + $0xa0] sm:$0xff] %v1675
    %1708 = vst [vmem:[%s3 + $0xa8] sm:$0xff] %v1676
    %1709 = vst [vmem:[%s3 + $0xb0] sm:$0xff] %v1677
    %1710 = vst [vmem:[%s3 + $0xb8] sm:$0xff] %v1678
    %1711 = vst [vmem:[%s3 + $0xc0] sm:$0xff] %v1679
    %1712 = vst [vmem:[%s3 + $0xc8] sm:$0xff] %v1680
    %1713 = vst [vmem:[%s3 + $0xd0] sm:$0xff] %v1681
    %1714 = vst [vmem:[%s3 + $0xd8] sm:$0xff] %v1682
    %1715 = vst [vmem:[%s3 + $0xe0] sm:$0xff] %v1683
    %1716 = vst [vmem:[%s3 + $0xe8] sm:$0xff] %v1684
    %1717 = vst [vmem:[%s3 + $0xf0] sm:$0xff] %v1685
    %1718 = vst [vmem:[%s3 + $0xf8] sm:$0xff] %v1686
    // Predicated region
    $region18: #{poly_conv_batch.1} parent=1 // pred_check
      _
    $region19: #{poly_conv_batch.1} parent=1 // pred_check_branch
      %1720 = sbr.rel (0) target = $region21
    $region20: #{poly_conv_batch.1} parent=1 // pred_region
      _
    $region21: #{poly_conv_batch.1} parent=1 // pred_fallthru
      _
    // Predicated region
    $region22: #{poly_conv_batch.1} parent=1 // pred_check
      _
    $region23: #{poly_conv_batch.1} parent=1 // pred_check_branch
      %1722 = sbr.rel (0) target = $region25
    $region24: #{poly_conv_batch.1} parent=1 // pred_region
      _
    $region25: #{poly_conv_batch.1} parent=1 // pred_fallthru
      _
    %1723 = vsyncpa [#allocation4], 1

</llo_original>
